<compile_context>
chip_gen: v7x
topology: tpu7x:2x2x1
jax: 0.10.0
libtpu: 0.0.40
codegen_flags: <defaults>
</compile_context>

<pallas_src>
import functools

import jax
import jax.numpy as jnp
from jax.experimental import pallas as pl
from jax.experimental.pallas import tpu as pltpu  # noqa: F401  (TPU backend)


PADDED_CLASSES = 128  # lane-dense classifier slab; real C columns sliced in wrapper


# ------------------------------ fused kernel --------------------------------

def _cermcnet_fused_kernel(
    patches_ref, posb_ref,
    patch_w_ref, qkv_w_ref, proj_w_ref, fc1_w_ref, fc2_w_ref, cls_w_ref,
    vec_ref,
    logits_ref,
    *, B, N, D, num_heads, head_dim, hidden, cpad, ln_eps):
  """Whole batch end-to-end in one invocation; everything resident in VMEM."""
  f32 = jnp.float32
  bf16 = lambda v: v.astype(jnp.bfloat16)
  BN = B * N

  # ---- unpack the packed small-vector slab (one static slice each) ----
  ln1_g = vec_ref[0:1, :D]
  ln1_b = vec_ref[1:2, :D]
  ln2_g = vec_ref[2:3, :D]
  ln2_b = vec_ref[3:4, :D]
  proj_b = vec_ref[4:5, :D]
  fc2_b = vec_ref[5:6, :D]
  fc1_b = vec_ref[6:7, :hidden]
  qkv_b = vec_ref[7:8, :3 * D]
  cls_b = vec_ref[8:9, :2 * cpad]

  def layernorm(v, g, b):
    mu = jnp.mean(v, axis=-1, keepdims=True)
    c = v - mu
    var = jnp.mean(c * c, axis=-1, keepdims=True)
    return c * jax.lax.rsqrt(var + ln_eps) * g + b

  # ---- patch embedding (+ pos embed & conv bias, pre-folded into posb) ----
  tok = jnp.dot(patches_ref[...], patch_w_ref[...],
                preferred_element_type=f32) + posb_ref[...]          # [BN, D] f32

  # ---- attention block (pre-LN); 1/sqrt(hd) folded into qkv_w q-columns ----
  h = layernorm(tok, ln1_g, ln1_b)
  qkv = jnp.dot(bf16(h), qkv_w_ref[...],
                preferred_element_type=f32) + qkv_b                  # [BN, 3D]

  # slice q/k/v ONCE as contiguous [BN, D] slabs, reshape to per-image layout
  q_all = qkv[:, 0:D].reshape(B, N, D)
  k_all = qkv[:, D:2 * D].reshape(B, N, D)
  v_all = qkv[:, 2 * D:3 * D].reshape(B, N, D)

  attn = None
  for hh in range(num_heads):          # static unroll over a tiny head count;
    lo = hh * head_dim                 # images are batched inside each head.
    q = bf16(q_all[:, :, lo:lo + head_dim])                          # [B, N, hd]
    k = bf16(k_all[:, :, lo:lo + head_dim])
    v = bf16(v_all[:, :, lo:lo + head_dim])
    s = jnp.einsum('bqd,bkd->bqk', q, k, preferred_element_type=f32)  # [B, N, N]
    s = s - jnp.max(s, axis=-1, keepdims=True)
    p = jnp.exp(s)
    p = p / jnp.sum(p, axis=-1, keepdims=True)
    o = jnp.einsum('bqk,bkd->bqd', bf16(p), v,
                   preferred_element_type=f32)                        # [B, N, hd]
    # head merge folded into the output projection:
    #   concat_h(o_h) @ W_proj == sum_h o_h @ W_proj[h*hd:(h+1)*hd, :]
    contrib = jnp.dot(bf16(o.reshape(BN, head_dim)),
                      proj_w_ref[lo:lo + head_dim, :],
                      preferred_element_type=f32)                     # [BN, D]
    attn = contrib if attn is None else attn + contrib
  tok = tok + attn + proj_b                                           # residual 1

  # ---- MLP block (pre-LN) ----
  h = layernorm(tok, ln2_g, ln2_b)
  h = jnp.dot(bf16(h), fc1_w_ref[...], preferred_element_type=f32) + fc1_b
  # TODO(synk): PyTorch nn.GELU defaults to exact erf GELU; tanh approximation is
  # used here for a guaranteed Mosaic lowering path (small systematic difference).
  h = jax.nn.gelu(h, approximate=True)
  h = jnp.dot(bf16(h), fc2_w_ref[...], preferred_element_type=f32) + fc2_b
  tok = tok + h                                                       # residual 2

  # ---- classifier: ONE matmul covers both heads (mean commutes with affine) ----
  logit_all = jnp.dot(bf16(tok), cls_w_ref[...],
                      preferred_element_type=f32) + cls_b             # [BN, 2*Cpad]
  patch_log = logit_all[:, :cpad]                                     # [BN, Cpad]
  img_log = jnp.mean(logit_all[:, cpad:].reshape(B, N, cpad), axis=1)  # [B, Cpad]

  # lane-dense output slab, direct row stores (no concatenate)
  logits_ref[0:BN, :] = patch_log
  logits_ref[BN:BN + B, :] = img_log


# ----------------------------- model definition -----------------------------

def init_params(key, *, img_size=16, patch_size=4, in_chans=3,
                embed_dim=32, num_heads=2, mlp_ratio=4, num_classes=4):
  num_patches = (img_size // patch_size) ** 2
  patch_dim = in_chans * patch_size * patch_size
  hidden = embed_dim * mlp_ratio
  ks = jax.random.split(key, 16)
  s = 0.02

  def nrm(k, shape):
    return (s * jax.random.normal(k, shape)).astype(jnp.float32)

  p = {
      # patch embedding (Conv2d(k=stride=patch_size) as matmul)
      "patch_w": nrm(ks[0], (patch_dim, embed_dim)),
      "patch_b": jnp.zeros((embed_dim,), jnp.float32),
      "pos_embed": nrm(ks[1], (1, num_patches, embed_dim)),
      # transformer block
      "ln1_g": jnp.ones((embed_dim,), jnp.float32),
      "ln1_b": jnp.zeros((embed_dim,), jnp.float32),
      "qkv_w": nrm(ks[2], (embed_dim, 3 * embed_dim)),
      "qkv_b": jnp.zeros((3 * embed_dim,), jnp.float32),
      "proj_w": nrm(ks[3], (embed_dim, embed_dim)),
      "proj_b": jnp.zeros((embed_dim,), jnp.float32),
      "ln2_g": jnp.ones((embed_dim,), jnp.float32),
      "ln2_b": jnp.zeros((embed_dim,), jnp.float32),
      "fc1_w": nrm(ks[4], (embed_dim, hidden)),
      "fc1_b": jnp.zeros((hidden,), jnp.float32),
      "fc2_w": nrm(ks[5], (hidden, embed_dim)),
      "fc2_b": jnp.zeros((embed_dim,), jnp.float32),
      # CerMClassifier head
      "cls_patch_w": nrm(ks[6], (embed_dim, num_classes)),
      "cls_patch_b": jnp.zeros((num_classes,), jnp.float32),
      "cls_img_w": nrm(ks[7], (embed_dim, num_classes)),
      "cls_img_b": jnp.zeros((num_classes,), jnp.float32),
  }
  cfg = dict(img_size=img_size, patch_size=patch_size, in_chans=in_chans,
             embed_dim=embed_dim, num_heads=num_heads,
             num_patches=num_patches, num_classes=num_classes)
  return p, cfg


def cermcnet_forward(params, cfg, x_nchw):
  """val_step semantics: backbone features -> classifier predictions."""
  B, Cin, H, W = x_nchw.shape
  p = cfg["patch_size"]
  D = cfg["embed_dim"]
  heads = cfg["num_heads"]
  hd = D // heads
  C = cfg["num_classes"]
  Cpad = PADDED_CLASSES
  nH, nW = H // p, W // p
  N = nH * nW
  Pdim = Cin * p * p
  Hmlp = params["fc1_w"].shape[1]
  BN = B * N

  # im2col: Conv2d(k=stride=patch_size) -> stacked tokens [B*N, C*p*p], bf16 operand
  patches = x_nchw.reshape(B, Cin, nH, p, nW, p).transpose(0, 2, 4, 1, 3, 5)
  patches = patches.reshape(BN, Pdim).astype(jnp.bfloat16)

  # pos_embed + conv bias, pre-folded and tiled to the stacked-token layout
  posb = params["pos_embed"].reshape(N, D) + params["patch_b"][None, :]
  posb = jnp.tile(posb, (B, 1)).astype(jnp.float32)                  # [BN, D]

  # fold 1/sqrt(hd) attention scale into the q columns of qkv weight AND bias
  scale = 1.0 / (hd ** 0.5)
  col_scale = jnp.concatenate([jnp.full((D,), scale, jnp.float32),
                               jnp.ones((2 * D,), jnp.float32)])
  qkv_w = (params["qkv_w"] * col_scale[None, :]).astype(jnp.bfloat16)
  qkv_b = params["qkv_b"] * col_scale

  # combined classifier weights: [D, 2*Cpad]; patch classes in lanes [0,Cpad),
  # image classes in [Cpad, 2*Cpad), both zero-padded to 128-wide lane groups.
  cls_w = jnp.concatenate(
      [jnp.pad(params["cls_patch_w"], ((0, 0), (0, Cpad - C))),
       jnp.pad(params["cls_img_w"], ((0, 0), (0, Cpad - C)))],
      axis=1).astype(jnp.bfloat16)
  cls_b = jnp.concatenate([jnp.pad(params["cls_patch_b"], (0, Cpad - C)),
                           jnp.pad(params["cls_img_b"], (0, Cpad - C))])

  # pack all small row vectors into ONE f32 slab -> single DMA descriptor
  VEC_W = max(2 * Cpad, Hmlp, 3 * D, 128)

  def row(v):
    v = v.astype(jnp.float32).reshape(-1)
    return jnp.pad(v, (0, VEC_W - v.shape[0]))

  vec = jnp.stack([row(params["ln1_g"]), row(params["ln1_b"]),
                   row(params["ln2_g"]), row(params["ln2_b"]),
                   row(params["proj_b"]), row(params["fc2_b"]),
                   row(params["fc1_b"]), row(qkv_b), row(cls_b)])    # [9, VEC_W]

  kernel = functools.partial(
      _cermcnet_fused_kernel, B=B, N=N, D=D, num_heads=heads, head_dim=hd,
      hidden=Hmlp, cpad=Cpad, ln_eps=1e-5)

  # Single invocation, no grid: total resident footprint (~60 KB) is far below the
  # VMEM limit on every TPU generation, so everything lives in VMEM at once.
  logits = pl.pallas_call(
      kernel,
      out_shape=jax.ShapeDtypeStruct((BN + B, Cpad), jnp.float32),
  )(patches, posb,
    params["patch_w"].astype(jnp.bfloat16), qkv_w,
    params["proj_w"].astype(jnp.bfloat16),
    params["fc1_w"].astype(jnp.bfloat16),
    params["fc2_w"].astype(jnp.bfloat16),
    cls_w, vec)

  patch_logits = logits[:BN, :C].reshape(B, N, C)
  image_logits = logits[BN:, :C]
  return {
      "patch_logits": patch_logits,                    # [B, N, C]
      "image_logits": image_logits,                    # [B, C]
      "image_pred": jnp.argmax(image_logits, axis=-1),  # [B]
  }


# ---------------------------------- main ------------------------------------

if __name__ == "__main__":
  key = jax.random.PRNGKey(0)
  k_param, k_x = jax.random.split(key)

  params, cfg = init_params(
      k_param, img_size=16, patch_size=4, in_chans=3,
      embed_dim=32, num_heads=2, mlp_ratio=4, num_classes=4)

  # NCHW input, matching PyTorch conv convention.
  x = jax.random.normal(k_x, (2, 3, 16, 16), dtype=jnp.float32)

  out = jax.jit(lambda p, xx: cermcnet_forward(p, cfg, xx))(params, x)
  jax.block_until_ready(out)

  assert out["patch_logits"].shape == (2, cfg["num_patches"], cfg["num_classes"])
  assert out["image_logits"].shape == (2, cfg["num_classes"])
  assert out["image_pred"].shape == (2,)
  print("KERNEL_OK")
</pallas_src>

<mosaic_0001>
module attributes {stable_mosaic.version = 11 : i64} {
  func.func @_cermcnet_fused_kernel(%arg0: memref<32x48xbf16, #tpu.memory_space<vmem>>, %arg1: memref<32x32xf32, #tpu.memory_space<vmem>>, %arg2: memref<48x32xbf16, #tpu.memory_space<vmem>>, %arg3: memref<32x96xbf16, #tpu.memory_space<vmem>>, %arg4: memref<32x32xbf16, #tpu.memory_space<vmem>>, %arg5: memref<32x128xbf16, #tpu.memory_space<vmem>>, %arg6: memref<128x32xbf16, #tpu.memory_space<vmem>>, %arg7: memref<32x256xbf16, #tpu.memory_space<vmem>>, %arg8: memref<9x256xf32, #tpu.memory_space<vmem>>, %arg9: memref<34x128xf32, #tpu.memory_space<vmem>>) attributes {dimension_semantics = [], scalar_prefetch = 0 : i64, scratch_operands = 0 : i64, tpu.core_type = #tpu.core_type<tc>} {
    %c0 = arith.constant 0 : index
    %c0_0 = arith.constant 0 : index
    %0 = vector.load %arg8[%c0, %c0_0] : memref<9x256xf32, #tpu.memory_space<vmem>>, vector<1x32xf32>
    %c1 = arith.constant 1 : index
    %c0_1 = arith.constant 0 : index
    %1 = vector.load %arg8[%c1, %c0_1] : memref<9x256xf32, #tpu.memory_space<vmem>>, vector<1x32xf32>
    %c2 = arith.constant 2 : index
    %c0_2 = arith.constant 0 : index
    %2 = vector.load %arg8[%c2, %c0_2] : memref<9x256xf32, #tpu.memory_space<vmem>>, vector<1x32xf32>
    %c3 = arith.constant 3 : index
    %c0_3 = arith.constant 0 : index
    %3 = vector.load %arg8[%c3, %c0_3] : memref<9x256xf32, #tpu.memory_space<vmem>>, vector<1x32xf32>
    %c4 = arith.constant 4 : index
    %c0_4 = arith.constant 0 : index
    %4 = vector.load %arg8[%c4, %c0_4] : memref<9x256xf32, #tpu.memory_space<vmem>>, vector<1x32xf32>
    %c5 = arith.constant 5 : index
    %c0_5 = arith.constant 0 : index
    %5 = vector.load %arg8[%c5, %c0_5] : memref<9x256xf32, #tpu.memory_space<vmem>>, vector<1x32xf32>
    %c6 = arith.constant 6 : index
    %c0_6 = arith.constant 0 : index
    %6 = vector.load %arg8[%c6, %c0_6] : memref<9x256xf32, #tpu.memory_space<vmem>>, vector<1x128xf32>
    %c7 = arith.constant 7 : index
    %c0_7 = arith.constant 0 : index
    %7 = vector.load %arg8[%c7, %c0_7] : memref<9x256xf32, #tpu.memory_space<vmem>>, vector<1x96xf32>
    %c8 = arith.constant 8 : index
    %c0_8 = arith.constant 0 : index
    %8 = vector.load %arg8[%c8, %c0_8] : memref<9x256xf32, #tpu.memory_space<vmem>>, vector<1x256xf32>
    %c0_9 = arith.constant 0 : index
    %c0_10 = arith.constant 0 : index
    %9 = vector.load %arg0[%c0_9, %c0_10] : memref<32x48xbf16, #tpu.memory_space<vmem>>, vector<32x48xbf16>
    %c0_11 = arith.constant 0 : index
    %c0_12 = arith.constant 0 : index
    %10 = vector.load %arg2[%c0_11, %c0_12] : memref<48x32xbf16, #tpu.memory_space<vmem>>, vector<48x32xbf16>
    %cst = arith.constant dense<0.000000e+00> : vector<32x32xf32>
    %11 = tpu.matmul %9, %10, %cst {dimension_numbers = #tpu.dot_dimension_numbers<[1], [0], [0], [1], [0, 0, 1, 1], [], []>} : vector<32x48xbf16>, vector<48x32xbf16>, vector<32x32xf32> -> vector<32x32xf32>
    %c0_13 = arith.constant 0 : index
    %c0_14 = arith.constant 0 : index
    %12 = vector.load %arg1[%c0_13, %c0_14] : memref<32x32xf32, #tpu.memory_space<vmem>>, vector<32x32xf32>
    %13 = arith.addf %11, %12 : vector<32x32xf32>
    %cst_15 = arith.constant dense<0.000000e+00> : vector<32xf32>
    %14 = vector.multi_reduction <add>, %13, %cst_15 [1] : vector<32x32xf32> to vector<32xf32>
    %15 = vector.shape_cast %14 : vector<32xf32> to vector<32x1xf32>
    %cst_16 = arith.constant 3.200000e+01 : f32
    %16 = vector.broadcast %cst_16 : f32 to vector<32x1xf32>
    %17 = arith.divf %15, %16 : vector<32x1xf32>
    %18 = vector.broadcast %17 : vector<32x1xf32> to vector<32x32xf32>
    %19 = arith.subf %13, %18 : vector<32x32xf32>
    %20 = arith.mulf %19, %19 : vector<32x32xf32>
    %cst_17 = arith.constant dense<0.000000e+00> : vector<32xf32>
    %21 = vector.multi_reduction <add>, %20, %cst_17 [1] : vector<32x32xf32> to vector<32xf32>
    %22 = vector.shape_cast %21 : vector<32xf32> to vector<32x1xf32>
    %cst_18 = arith.constant 3.200000e+01 : f32
    %23 = vector.broadcast %cst_18 : f32 to vector<32x1xf32>
    %24 = arith.divf %22, %23 : vector<32x1xf32>
    %cst_19 = arith.constant 9.99999974E-6 : f32
    %25 = vector.broadcast %cst_19 : f32 to vector<32x1xf32>
    %26 = arith.addf %24, %25 : vector<32x1xf32>
    %27 = math.rsqrt %26 : vector<32x1xf32>
    %28 = vector.broadcast %27 : vector<32x1xf32> to vector<32x32xf32>
    %29 = arith.mulf %19, %28 : vector<32x32xf32>
    %30 = vector.broadcast %0 : vector<1x32xf32> to vector<32x32xf32>
    %31 = arith.mulf %29, %30 : vector<32x32xf32>
    %32 = vector.broadcast %1 : vector<1x32xf32> to vector<32x32xf32>
    %33 = arith.addf %31, %32 : vector<32x32xf32>
    %34 = arith.truncf %33 : vector<32x32xf32> to vector<32x32xbf16>
    %c0_20 = arith.constant 0 : index
    %c0_21 = arith.constant 0 : index
    %35 = vector.load %arg3[%c0_20, %c0_21] : memref<32x96xbf16, #tpu.memory_space<vmem>>, vector<32x96xbf16>
    %cst_22 = arith.constant dense<0.000000e+00> : vector<32x96xf32>
    %36 = tpu.matmul %34, %35, %cst_22 {dimension_numbers = #tpu.dot_dimension_numbers<[1], [0], [0], [1], [0, 0, 1, 1], [], []>} : vector<32x32xbf16>, vector<32x96xbf16>, vector<32x96xf32> -> vector<32x96xf32>
    %37 = vector.broadcast %7 : vector<1x96xf32> to vector<32x96xf32>
    %38 = arith.addf %36, %37 : vector<32x96xf32>
    %39 = vector.extract_strided_slice %38 {offsets = [0, 0], sizes = [32, 32], strides = [1, 1]} : vector<32x96xf32> to vector<32x32xf32>
    %40 = vector.shape_cast %39 : vector<32x32xf32> to vector<2x16x32xf32>
    %41 = vector.extract_strided_slice %38 {offsets = [0, 32], sizes = [32, 32], strides = [1, 1]} : vector<32x96xf32> to vector<32x32xf32>
    %42 = vector.shape_cast %41 : vector<32x32xf32> to vector<2x16x32xf32>
    %43 = vector.extract_strided_slice %38 {offsets = [0, 64], sizes = [32, 32], strides = [1, 1]} : vector<32x96xf32> to vector<32x32xf32>
    %44 = vector.shape_cast %43 : vector<32x32xf32> to vector<2x16x32xf32>
    %45 = vector.extract_strided_slice %40 {offsets = [0, 0, 0], sizes = [2, 16, 16], strides = [1, 1, 1]} : vector<2x16x32xf32> to vector<2x16x16xf32>
    %46 = arith.truncf %45 : vector<2x16x16xf32> to vector<2x16x16xbf16>
    %47 = vector.extract_strided_slice %42 {offsets = [0, 0, 0], sizes = [2, 16, 16], strides = [1, 1, 1]} : vector<2x16x32xf32> to vector<2x16x16xf32>
    %48 = arith.truncf %47 : vector<2x16x16xf32> to vector<2x16x16xbf16>
    %49 = vector.extract_strided_slice %44 {offsets = [0, 0, 0], sizes = [2, 16, 16], strides = [1, 1, 1]} : vector<2x16x32xf32> to vector<2x16x16xf32>
    %50 = arith.truncf %49 : vector<2x16x16xf32> to vector<2x16x16xbf16>
    "tpu.trace_start"() <{level = 10 : i32, message = "bqd,bkd->bqk"}> : () -> ()
    %cst_23 = arith.constant dense<0.000000e+00> : vector<2x16x16xf32>
    %51 = tpu.matmul %46, %48, %cst_23 {dimension_numbers = #tpu.dot_dimension_numbers<[2], [2], [1], [1], [0, 0, 0, 1, 1, 1], [0], [0]>} : vector<2x16x16xbf16>, vector<2x16x16xbf16>, vector<2x16x16xf32> -> vector<2x16x16xf32>
    "tpu.trace_stop"() : () -> ()
    %cst_24 = arith.constant dense<0xFF800000> : vector<2x16xf32>
    %52 = vector.multi_reduction <maximumf>, %51, %cst_24 [2] : vector<2x16x16xf32> to vector<2x16xf32>
    %53 = vector.shape_cast %52 : vector<2x16xf32> to vector<2x16x1xf32>
    %54 = vector.broadcast %53 : vector<2x16x1xf32> to vector<2x16x16xf32>
    %55 = arith.subf %51, %54 : vector<2x16x16xf32>
    %56 = math.exp %55 : vector<2x16x16xf32>
    %cst_25 = arith.constant dense<0.000000e+00> : vector<2x16xf32>
    %57 = vector.multi_reduction <add>, %56, %cst_25 [2] : vector<2x16x16xf32> to vector<2x16xf32>
    %58 = vector.shape_cast %57 : vector<2x16xf32> to vector<2x16x1xf32>
    %59 = vector.broadcast %58 : vector<2x16x1xf32> to vector<2x16x16xf32>
    %60 = arith.divf %56, %59 : vector<2x16x16xf32>
    %61 = arith.truncf %60 : vector<2x16x16xf32> to vector<2x16x16xbf16>
    "tpu.trace_start"() <{level = 10 : i32, message = "bqk,bkd->bqd"}> : () -> ()
    %cst_26 = arith.constant dense<0.000000e+00> : vector<2x16x16xf32>
    %62 = tpu.matmul %61, %50, %cst_26 {dimension_numbers = #tpu.dot_dimension_numbers<[2], [1], [1], [2], [0, 0, 0, 1, 1, 2], [0], [0]>} : vector<2x16x16xbf16>, vector<2x16x16xbf16>, vector<2x16x16xf32> -> vector<2x16x16xf32>
    "tpu.trace_stop"() : () -> ()
    %63 = vector.shape_cast %62 : vector<2x16x16xf32> to vector<32x16xf32>
    %64 = arith.truncf %63 : vector<32x16xf32> to vector<32x16xbf16>
    %c0_27 = arith.constant 0 : index
    %c0_28 = arith.constant 0 : index
    %65 = vector.load %arg4[%c0_27, %c0_28] : memref<32x32xbf16, #tpu.memory_space<vmem>>, vector<16x32xbf16>
    %cst_29 = arith.constant dense<0.000000e+00> : vector<32x32xf32>
    %66 = tpu.matmul %64, %65, %cst_29 {dimension_numbers = #tpu.dot_dimension_numbers<[1], [0], [0], [1], [0, 0, 1, 1], [], []>} : vector<32x16xbf16>, vector<16x32xbf16>, vector<32x32xf32> -> vector<32x32xf32>
    %67 = vector.extract_strided_slice %40 {offsets = [0, 0, 16], sizes = [2, 16, 16], strides = [1, 1, 1]} : vector<2x16x32xf32> to vector<2x16x16xf32>
    %68 = arith.truncf %67 : vector<2x16x16xf32> to vector<2x16x16xbf16>
    %69 = vector.extract_strided_slice %42 {offsets = [0, 0, 16], sizes = [2, 16, 16], strides = [1, 1, 1]} : vector<2x16x32xf32> to vector<2x16x16xf32>
    %70 = arith.truncf %69 : vector<2x16x16xf32> to vector<2x16x16xbf16>
    %71 = vector.extract_strided_slice %44 {offsets = [0, 0, 16], sizes = [2, 16, 16], strides = [1, 1, 1]} : vector<2x16x32xf32> to vector<2x16x16xf32>
    %72 = arith.truncf %71 : vector<2x16x16xf32> to vector<2x16x16xbf16>
    "tpu.trace_start"() <{level = 10 : i32, message = "bqd,bkd->bqk"}> : () -> ()
    %cst_30 = arith.constant dense<0.000000e+00> : vector<2x16x16xf32>
    %73 = tpu.matmul %68, %70, %cst_30 {dimension_numbers = #tpu.dot_dimension_numbers<[2], [2], [1], [1], [0, 0, 0, 1, 1, 1], [0], [0]>} : vector<2x16x16xbf16>, vector<2x16x16xbf16>, vector<2x16x16xf32> -> vector<2x16x16xf32>
    "tpu.trace_stop"() : () -> ()
    %cst_31 = arith.constant dense<0xFF800000> : vector<2x16xf32>
    %74 = vector.multi_reduction <maximumf>, %73, %cst_31 [2] : vector<2x16x16xf32> to vector<2x16xf32>
    %75 = vector.shape_cast %74 : vector<2x16xf32> to vector<2x16x1xf32>
    %76 = vector.broadcast %75 : vector<2x16x1xf32> to vector<2x16x16xf32>
    %77 = arith.subf %73, %76 : vector<2x16x16xf32>
    %78 = math.exp %77 : vector<2x16x16xf32>
    %cst_32 = arith.constant dense<0.000000e+00> : vector<2x16xf32>
    %79 = vector.multi_reduction <add>, %78, %cst_32 [2] : vector<2x16x16xf32> to vector<2x16xf32>
    %80 = vector.shape_cast %79 : vector<2x16xf32> to vector<2x16x1xf32>
    %81 = vector.broadcast %80 : vector<2x16x1xf32> to vector<2x16x16xf32>
    %82 = arith.divf %78, %81 : vector<2x16x16xf32>
    %83 = arith.truncf %82 : vector<2x16x16xf32> to vector<2x16x16xbf16>
    "tpu.trace_start"() <{level = 10 : i32, message = "bqk,bkd->bqd"}> : () -> ()
    %cst_33 = arith.constant dense<0.000000e+00> : vector<2x16x16xf32>
    %84 = tpu.matmul %83, %72, %cst_33 {dimension_numbers = #tpu.dot_dimension_numbers<[2], [1], [1], [2], [0, 0, 0, 1, 1, 2], [0], [0]>} : vector<2x16x16xbf16>, vector<2x16x16xbf16>, vector<2x16x16xf32> -> vector<2x16x16xf32>
    "tpu.trace_stop"() : () -> ()
    %85 = vector.shape_cast %84 : vector<2x16x16xf32> to vector<32x16xf32>
    %86 = arith.truncf %85 : vector<32x16xf32> to vector<32x16xbf16>
    %c16 = arith.constant 16 : index
    %c0_34 = arith.constant 0 : index
    %87 = vector.load %arg4[%c16, %c0_34] : memref<32x32xbf16, #tpu.memory_space<vmem>>, vector<16x32xbf16>
    %cst_35 = arith.constant dense<0.000000e+00> : vector<32x32xf32>
    %88 = tpu.matmul %86, %87, %cst_35 {dimension_numbers = #tpu.dot_dimension_numbers<[1], [0], [0], [1], [0, 0, 1, 1], [], []>} : vector<32x16xbf16>, vector<16x32xbf16>, vector<32x32xf32> -> vector<32x32xf32>
    %89 = arith.addf %66, %88 : vector<32x32xf32>
    %90 = arith.addf %13, %89 : vector<32x32xf32>
    %91 = vector.broadcast %4 : vector<1x32xf32> to vector<32x32xf32>
    %92 = arith.addf %90, %91 : vector<32x32xf32>
    %cst_36 = arith.constant dense<0.000000e+00> : vector<32xf32>
    %93 = vector.multi_reduction <add>, %92, %cst_36 [1] : vector<32x32xf32> to vector<32xf32>
    %94 = vector.shape_cast %93 : vector<32xf32> to vector<32x1xf32>
    %cst_37 = arith.constant 3.200000e+01 : f32
    %95 = vector.broadcast %cst_37 : f32 to vector<32x1xf32>
    %96 = arith.divf %94, %95 : vector<32x1xf32>
    %97 = vector.broadcast %96 : vector<32x1xf32> to vector<32x32xf32>
    %98 = arith.subf %92, %97 : vector<32x32xf32>
    %99 = arith.mulf %98, %98 : vector<32x32xf32>
    %cst_38 = arith.constant dense<0.000000e+00> : vector<32xf32>
    %100 = vector.multi_reduction <add>, %99, %cst_38 [1] : vector<32x32xf32> to vector<32xf32>
    %101 = vector.shape_cast %100 : vector<32xf32> to vector<32x1xf32>
    %cst_39 = arith.constant 3.200000e+01 : f32
    %102 = vector.broadcast %cst_39 : f32 to vector<32x1xf32>
    %103 = arith.divf %101, %102 : vector<32x1xf32>
    %cst_40 = arith.constant 9.99999974E-6 : f32
    %104 = vector.broadcast %cst_40 : f32 to vector<32x1xf32>
    %105 = arith.addf %103, %104 : vector<32x1xf32>
    %106 = math.rsqrt %105 : vector<32x1xf32>
    %107 = vector.broadcast %106 : vector<32x1xf32> to vector<32x32xf32>
    %108 = arith.mulf %98, %107 : vector<32x32xf32>
    %109 = vector.broadcast %2 : vector<1x32xf32> to vector<32x32xf32>
    %110 = arith.mulf %108, %109 : vector<32x32xf32>
    %111 = vector.broadcast %3 : vector<1x32xf32> to vector<32x32xf32>
    %112 = arith.addf %110, %111 : vector<32x32xf32>
    %113 = arith.truncf %112 : vector<32x32xf32> to vector<32x32xbf16>
    %c0_41 = arith.constant 0 : index
    %c0_42 = arith.constant 0 : index
    %114 = vector.load %arg5[%c0_41, %c0_42] : memref<32x128xbf16, #tpu.memory_space<vmem>>, vector<32x128xbf16>
    %cst_43 = arith.constant dense<0.000000e+00> : vector<32x128xf32>
    %115 = tpu.matmul %113, %114, %cst_43 {dimension_numbers = #tpu.dot_dimension_numbers<[1], [0], [0], [1], [0, 0, 1, 1], [], []>} : vector<32x32xbf16>, vector<32x128xbf16>, vector<32x128xf32> -> vector<32x128xf32>
    %116 = vector.broadcast %6 : vector<1x128xf32> to vector<32x128xf32>
    %117 = arith.addf %115, %116 : vector<32x128xf32>
    %118 = arith.mulf %117, %117 : vector<32x128xf32>
    %119 = arith.mulf %117, %118 : vector<32x128xf32>
    %cst_44 = arith.constant 4.471500e-02 : f32
    %120 = vector.broadcast %cst_44 : f32 to vector<32x128xf32>
    %121 = arith.mulf %120, %119 : vector<32x128xf32>
    %122 = arith.addf %117, %121 : vector<32x128xf32>
    %cst_45 = arith.constant 0.797884583 : f32
    %123 = vector.broadcast %cst_45 : f32 to vector<32x128xf32>
    %124 = arith.mulf %123, %122 : vector<32x128xf32>
    %125 = math.tanh %124 : vector<32x128xf32>
    %cst_46 = arith.constant 1.000000e+00 : f32
    %126 = vector.broadcast %cst_46 : f32 to vector<32x128xf32>
    %127 = arith.addf %126, %125 : vector<32x128xf32>
    %cst_47 = arith.constant 5.000000e-01 : f32
    %128 = vector.broadcast %cst_47 : f32 to vector<32x128xf32>
    %129 = arith.mulf %128, %127 : vector<32x128xf32>
    %130 = arith.mulf %117, %129 : vector<32x128xf32>
    %131 = arith.truncf %130 : vector<32x128xf32> to vector<32x128xbf16>
    %c0_48 = arith.constant 0 : index
    %c0_49 = arith.constant 0 : index
    %132 = vector.load %arg6[%c0_48, %c0_49] : memref<128x32xbf16, #tpu.memory_space<vmem>>, vector<128x32xbf16>
    %cst_50 = arith.constant dense<0.000000e+00> : vector<32x32xf32>
    %133 = tpu.matmul %131, %132, %cst_50 {dimension_numbers = #tpu.dot_dimension_numbers<[1], [0], [0], [1], [0, 0, 1, 1], [], []>} : vector<32x128xbf16>, vector<128x32xbf16>, vector<32x32xf32> -> vector<32x32xf32>
    %134 = vector.broadcast %5 : vector<1x32xf32> to vector<32x32xf32>
    %135 = arith.addf %133, %134 : vector<32x32xf32>
    %136 = arith.addf %92, %135 : vector<32x32xf32>
    %137 = arith.truncf %136 : vector<32x32xf32> to vector<32x32xbf16>
    %c0_51 = arith.constant 0 : index
    %c0_52 = arith.constant 0 : index
    %138 = vector.load %arg7[%c0_51, %c0_52] : memref<32x256xbf16, #tpu.memory_space<vmem>>, vector<32x256xbf16>
    %cst_53 = arith.constant dense<0.000000e+00> : vector<32x256xf32>
    %139 = tpu.matmul %137, %138, %cst_53 {dimension_numbers = #tpu.dot_dimension_numbers<[1], [0], [0], [1], [0, 0, 1, 1], [], []>} : vector<32x32xbf16>, vector<32x256xbf16>, vector<32x256xf32> -> vector<32x256xf32>
    %140 = vector.broadcast %8 : vector<1x256xf32> to vector<32x256xf32>
    %141 = arith.addf %139, %140 : vector<32x256xf32>
    %142 = vector.extract_strided_slice %141 {offsets = [0, 0], sizes = [32, 128], strides = [1, 1]} : vector<32x256xf32> to vector<32x128xf32>
    %143 = vector.extract_strided_slice %141 {offsets = [0, 128], sizes = [32, 128], strides = [1, 1]} : vector<32x256xf32> to vector<32x128xf32>
    %144 = vector.shape_cast %143 : vector<32x128xf32> to vector<2x16x128xf32>
    %cst_54 = arith.constant dense<0.000000e+00> : vector<2x128xf32>
    %145 = vector.multi_reduction <add>, %144, %cst_54 [1] : vector<2x16x128xf32> to vector<2x128xf32>
    %cst_55 = arith.constant 1.600000e+01 : f32
    %146 = vector.broadcast %cst_55 : f32 to vector<2x128xf32>
    %147 = arith.divf %145, %146 : vector<2x128xf32>
    %c0_56 = arith.constant 0 : index
    %c0_57 = arith.constant 0 : index
    %148 = vector.load %arg9[%c0_56, %c0_57] : memref<34x128xf32, #tpu.memory_space<vmem>>, vector<32x128xf32>
    tpu.vector_store %arg9[%c0_56, %c0_57], %142 {strides = array<i32>} : memref<34x128xf32, #tpu.memory_space<vmem>>, vector<32x128xf32>,
    %c32 = arith.constant 32 : index
    %c0_58 = arith.constant 0 : index
    %149 = vector.load %arg9[%c32, %c0_58] : memref<34x128xf32, #tpu.memory_space<vmem>>, vector<2x128xf32>
    tpu.vector_store %arg9[%c32, %c0_58], %147 {strides = array<i32>} : memref<34x128xf32, #tpu.memory_space<vmem>>, vector<2x128xf32>,
    return
  }
}

</mosaic_0001>

<llo_original>
// kernel: mul.9
$region0: #{mul.9}
  #allocation0 [shape = 's32[1]{0}', space=sflag, size = 0x4, scoped, tag = 'scoped memory for mul.9']
  %s0 = inlined_call_operand.vmem [shape: f32[96], index: 0, kind: input, shape index: {}]
  %s1 = inlined_call_operand.vmem [shape: f32[96], index: 1, kind: input, shape index: {}]
  %s2 = inlined_call_operand.vmem [shape: f32[96], index: 2, kind: output, shape index: {}]
  %v3 = vld [vmem:[%s0] sm:$0x1]
  %v4 = vld [vmem:[%s1] sm:$0x1]
  %5 = xla_tuple %v3, %v4
  %6 = xla_tuple %5
  %v7 = vmul.f32 %v3, %v4
  %8 = xla_tuple %v7
  %9 = vst [vmem:[%s2] sm:$0x1] %v7

// kernel: _lambda_.1
$region0: #{_lambda_.1}
  #allocation0 [shape = 'u32[]', space=smem, size = 0x4, offset = 0x4, fixed_abs, tag = 'smem constant byte address 0x4 - core index']
  #allocation1 [shape = 'u32[144,128]{1,0:T(1,128)}', space=vmem, size = 0x12000, scoped, tag = 'internal scratch']
  %s0 = inlined_call_operand.vmem [shape: bf16[32,48], index: 0, kind: input, shape index: {}]
  %s1 = inlined_call_operand.vmem [shape: f32[32,32], index: 1, kind: input, shape index: {}]
  %s2 = inlined_call_operand.vmem [shape: bf16[48,32], index: 2, kind: input, shape index: {}]
  %s3 = inlined_call_operand.vmem [shape: bf16[32,96], index: 3, kind: input, shape index: {}]
  %s4 = inlined_call_operand.vmem [shape: bf16[32,32], index: 4, kind: input, shape index: {}]
  %s5 = inlined_call_operand.vmem [shape: bf16[32,128], index: 5, kind: input, shape index: {}]
  %s6 = inlined_call_operand.vmem [shape: bf16[128,32], index: 6, kind: input, shape index: {}]
  %s7 = inlined_call_operand.vmem [shape: bf16[32,256], index: 7, kind: input, shape index: {}]
  %s8 = inlined_call_operand.vmem [shape: f32[9,256], index: 8, kind: input, shape index: {}]
  %s9 = inlined_call_operand.vmem [shape: f32[34,128], index: 9, kind: output, shape index: {}]
  %s10 = sld [smem:[#allocation0]]
  $region46: #{_lambda_.1} parent=0
    _
  %s12 = ssub.s32 1, %s10
  %s13 = scalar_select 0, %s12, %s10
  // Predicated region
  $region2: #{_lambda_.1} parent=0 // pred_check
    _
  $region3: #{_lambda_.1} parent=0 // pred_check_branch
    %15 = sbr.rel (0) target = $region5
  $region4: #{_lambda_.1} parent=0 // pred_region
    _
  $region5: #{_lambda_.1} parent=0 // pred_fallthru
    _
  // Predicated region
  $region6: #{_lambda_.1} parent=0 // pred_check
    _
  $region7: #{_lambda_.1} parent=0 // pred_check_branch
    %17 = sbr.rel (0) target = $region9
  $region8: #{_lambda_.1} parent=0 // pred_region
    _
  $region9: #{_lambda_.1} parent=0 // pred_fallthru
    _
  // Predicated region
  $region10: #{_lambda_.1} parent=0 // pred_check
    _
  $region11: #{_lambda_.1} parent=0 // pred_check_branch
    %19 = sbr.rel (0) target = $region13
  $region12: #{_lambda_.1} parent=0 // pred_region
    _
  $region13: #{_lambda_.1} parent=0 // pred_fallthru
    _
  // Predicated region
  $region14: #{_lambda_.1} parent=0 // pred_check
    _
  $region15: #{_lambda_.1} parent=0 // pred_check_branch
    %21 = sbr.rel (0) target = $region17
  $region16: #{_lambda_.1} parent=0 // pred_region
    _
  $region17: #{_lambda_.1} parent=0 // pred_fallthru
    _
  // Predicated region
  $region18: #{_lambda_.1} parent=0 // pred_check
    _
  $region19: #{_lambda_.1} parent=0 // pred_check_branch
    %23 = sbr.rel (0) target = $region21
  $region20: #{_lambda_.1} parent=0 // pred_region
    _
  $region21: #{_lambda_.1} parent=0 // pred_fallthru
    _
  // Predicated region
  $region22: #{_lambda_.1} parent=0 // pred_check
    _
  $region23: #{_lambda_.1} parent=0 // pred_check_branch
    %25 = sbr.rel (0) target = $region25
  $region24: #{_lambda_.1} parent=0 // pred_region
    _
  $region25: #{_lambda_.1} parent=0 // pred_fallthru
    _
  // Predicated region
  $region26: #{_lambda_.1} parent=0 // pred_check
    _
  $region27: #{_lambda_.1} parent=0 // pred_check_branch
    %27 = sbr.rel (0) target = $region29
  $region28: #{_lambda_.1} parent=0 // pred_region
    _
  $region29: #{_lambda_.1} parent=0 // pred_fallthru
    _
  // Predicated region
  $region30: #{_lambda_.1} parent=0 // pred_check
    _
  $region31: #{_lambda_.1} parent=0 // pred_check_branch
    %29 = sbr.rel (0) target = $region33
  $region32: #{_lambda_.1} parent=0 // pred_region
    _
  $region33: #{_lambda_.1} parent=0 // pred_fallthru
    _
  // Predicated region
  $region34: #{_lambda_.1} parent=0 // pred_check
    _
  $region35: #{_lambda_.1} parent=0 // pred_check_branch
    %31 = sbr.rel (0) target = $region37
  $region36: #{_lambda_.1} parent=0 // pred_region
    _
  $region37: #{_lambda_.1} parent=0 // pred_fallthru
    _
  %v33 = vld [vmem:[%s8] ss:$0 sm:$0xff]
  %v34 = vld [vmem:[%s8 + $0x1] ss:$0 sm:$0xff]
  %v35 = vld [vmem:[%s8 + $0x2] ss:$0 sm:$0xff]
  %v36 = vld [vmem:[%s8 + $0x3] ss:$0 sm:$0xff]
  %v37 = vld [vmem:[%s8 + $0x4] ss:$0 sm:$0xff]
  %v38 = vld [vmem:[%s8 + $0x5] ss:$0 sm:$0xff]
  %v39 = vld [vmem:[%s8 + $0x6] ss:$0 sm:$0xff]
  %v40 = vld [vmem:[%s8 + $0x7] ss:$0 sm:$0xff]
  %s41 = scalar_lea.vmem %s8, 16
  %v42 = vld [vmem:[%s41] ss:$8 sm:$0x3]
  %v43 = vld [vmem:[%s0] sm:$0xf]
  %v44 = vld [vmem:[%s0 + $0x4] sm:$0xf]
  %v45 = vld [vmem:[%s0 + $0x8] sm:$0xf]
  %v46 = vld [vmem:[%s0 + $0xc] sm:$0xf]
  %v47 = vld [vmem:[%s2] sm:$0xf]
  %v48 = vld [vmem:[%s2 + $0x4] sm:$0xf]
  %v49 = vld [vmem:[%s2 + $0x8] sm:$0xf]
  %v50 = vld [vmem:[%s2 + $0xc] sm:$0xf]
  %v51 = vld [vmem:[%s2 + $0x10] sm:$0xf]
  %v52 = vld [vmem:[%s2 + $0x14] sm:$0xf]
  %v53 = vld [vmem:[%s1] sm:$0xff]
  %v54 = vld [vmem:[%s1 + $0x8] sm:$0xff]
  %v55 = vld [vmem:[%s1 + $0x10] sm:$0xff]
  %v56 = vld [vmem:[%s1 + $0x18] sm:$0xff]
  %v61 = vunpack.c.l.b16 %v43
  %v62 = vunpack.c.l.b16 %v44
  %v63 = vunpack.c.l.b16 %v45
  %v64 = vunpack.c.l.b16 %v46
  %v65 = vpack.c.b16 %v62, %v61
  %v66 = vpack.c.b16 %v64, %v63
  %v73 = vunpack.c.l.b16 %v47
  %v74 = vunpack.c.l.b16 %v48
  %v75 = vunpack.c.l.b16 %v49
  %v76 = vunpack.c.l.b16 %v50
  %v77 = vunpack.c.l.b16 %v51
  %v78 = vunpack.c.l.b16 %v52
  %v79 = vpack.c.b16 %v74, %v73
  %v80 = vpack.c.b16 %v76, %v75
  %v81 = vpack.c.b16 %v78, %v77
  %vm85 = vcmask 392192
  %v87 = vsel %vm85, %v65, 0
  %v90 = vsel %vm85, %v66, 0
  %92 = vmatprep.subr.bf16.mxu0 0
  %93 = vmatpush1.bf16.msra.mxu0 %v79
  %94 = vmatprep.subr.bf16.mxu0 0
  %95 = vmatpush1.bf16.msra.mxu0 %v80
  %96 = vmatprep.subr.bf16.mxu0 0
  %97 = vmatpush1.bf16.msra.mxu0 %v81
  %98 = vmatprep.subr.bf16.mxu0 0
  %99 = vmatpush1.bf16.msra.mxu0 0
  %100 = vmatprep.subr.bf16.mxu0 0
  %101 = vmatpush1.bf16.msra.mxu0 0
  %102 = vmatprep.subr.bf16.mxu0 0
  %103 = vmatpush1.bf16.msra.mxu0 0
  %104 = vmatprep.subr.bf16.mxu0 0
  %105 = vmatpush1.bf16.msra.mxu0 0
  %106 = vmatprep.subr.bf16.mxu0 0
  %107 = vmatpush1.bf16.msra.mxu0 0
  %108 = vmatprep.subr.bf16.mxu0 0
  %109 = vmatpush1.bf16.msra.mxu0 0
  %110 = vmatprep.subr.bf16.mxu0 0
  %111 = vmatpush1.bf16.msra.mxu0 0
  %112 = vmatprep.subr.bf16.mxu0 0
  %113 = vmatpush1.bf16.msra.mxu0 0
  %114 = vmatprep.subr.bf16.mxu0 0
  %115 = vmatpush1.bf16.msra.mxu0 0
  %116 = vmatprep.subr.bf16.mxu0 0
  %117 = vmatpush1.bf16.msra.mxu0 0
  %118 = vmatprep.subr.bf16.mxu0 0
  %119 = vmatpush1.bf16.msra.mxu0 0
  %120 = vmatprep.subr.bf16.mxu0 0
  %121 = vmatpush1.bf16.msra.mxu0 0
  %122 = vmatprep.subr.bf16.mxu0 0
  %123 = vmatpush1.bf16.msra.mxu0 0
  %124 = vmatprep.mubr.bf16.mxu0 0
  %125 = vmatmul.mubr.bf16.gmra.mrb[0].mxu0 %v87
  %v126 = vpop.f32.mrb[0].mxu0
  %v127 = vadd.f32 %v53, %v126
  %v128 = vpop.f32.mrb[0].mxu0
  %v129 = vpop.f32.mrb[0].mxu0
  %v130 = vadd.f32 %v54, %v129
  %v131 = vpop.f32.mrb[0].mxu0
  %132 = vmatprep.mubr.bf16.mxu0 0
  %133 = vmatmul.mubr.bf16.gmra.mrb[0].mxu0 %v90
  %v134 = vpop.f32.mrb[0].mxu0
  %v135 = vadd.f32 %v55, %v134
  %v136 = vpop.f32.mrb[0].mxu0
  %v137 = vpop.f32.mrb[0].mxu0
  %v138 = vadd.f32 %v56, %v137
  %v139 = vpop.f32.mrb[0].mxu0
  %140 = vdwg.mxu0
  %vm141 = vcmask 261120
  %v142 = vsel %vm141, %v127, 0.0
  %143 = vadd.xlane.f32.xlu0 %v142
  %v144 = vpop.xlane.xlu0 %143
  %v145 = vsel %vm141, %v130, 0.0
  %146 = vadd.xlane.f32.xlu0 %v145
  %v147 = vpop.xlane.xlu0 %146
  %v148 = vsel %vm141, %v135, 0.0
  %149 = vadd.xlane.f32.xlu0 %v148
  %v150 = vpop.xlane.xlu0 %149
  %v151 = vsel %vm141, %v138, 0.0
  %152 = vadd.xlane.f32.xlu0 %v151
  %v153 = vpop.xlane.xlu0 %152
  %v154 = vrcp.pop 32.0
  %v155 = vmul.f32 %v144, %v154
  %v156 = vmul.f32 %v147, %v154
  %v157 = vmul.f32 %v150, %v154
  %v158 = vmul.f32 %v153, %v154
  %v159 = vsub.f32 %v127, %v155
  %v160 = vsub.f32 %v130, %v156
  %v161 = vsub.f32 %v135, %v157
  %v162 = vsub.f32 %v138, %v158
  %v163 = vmul.f32 %v159, %v159
  %v164 = vmul.f32 %v160, %v160
  %v165 = vmul.f32 %v161, %v161
  %v166 = vmul.f32 %v162, %v162
  %v167 = vsel %vm141, %v163, 0.0
  %168 = vadd.xlane.f32.xlu0 %v167
  %v169 = vpop.xlane.xlu0 %168
  %v170 = vsel %vm141, %v164, 0.0
  %171 = vadd.xlane.f32.xlu0 %v170
  %v172 = vpop.xlane.xlu0 %171
  %v173 = vsel %vm141, %v165, 0.0
  %174 = vadd.xlane.f32.xlu0 %v173
  %v175 = vpop.xlane.xlu0 %174
  %v176 = vsel %vm141, %v166, 0.0
  %177 = vadd.xlane.f32.xlu0 %v176
  %v178 = vpop.xlane.xlu0 %177
  %v179 = vmul.f32 %v169, %v154
  %v180 = vmul.f32 %v172, %v154
  %v181 = vmul.f32 %v175, %v154
  %v182 = vmul.f32 %v178, %v154
  %v183 = vadd.f32 %v179, 1e-05
  %v184 = vadd.f32 %v180, 1e-05
  %v185 = vadd.f32 %v181, 1e-05
  %v186 = vadd.f32 %v182, 1e-05
  %v187 = vrsqrt.pop %v183
  %v188 = vrsqrt.pop %v184
  %v189 = vrsqrt.pop %v185
  %v190 = vrsqrt.pop %v186
  %v191 = vmul.f32 %v159, %v187
  %v192 = vmul.f32 %v160, %v188
  %v193 = vmul.f32 %v161, %v189
  %v194 = vmul.f32 %v162, %v190
  %v195 = vmul.f32 %v191, %v33
  %v196 = vmul.f32 %v192, %v33
  %v197 = vmul.f32 %v193, %v33
  %v198 = vmul.f32 %v194, %v33
  %v199 = vadd.f32 %v195, %v34
  %v200 = vadd.f32 %v196, %v34
  %v201 = vadd.f32 %v197, %v34
  %v202 = vadd.f32 %v198, %v34
  %v203 = vpack.c.bf16 %v200, %v199
  %v204 = vpack.c.bf16 %v202, %v201
  %v205 = vld [vmem:[%s3] sm:$0xf]
  %v206 = vld [vmem:[%s3 + $0x4] sm:$0xf]
  %v207 = vld [vmem:[%s3 + $0x8] sm:$0xf]
  %v208 = vld [vmem:[%s3 + $0xc] sm:$0xf]
  %v213 = vunpack.c.l.b16 %v205
  %v214 = vunpack.c.l.b16 %v206
  %v215 = vunpack.c.l.b16 %v207
  %v216 = vunpack.c.l.b16 %v208
  %v217 = vpack.c.b16 %v214, %v213
  %v218 = vpack.c.b16 %v216, %v215
  %v222 = vsel %vm141, %v203, 0
  %v225 = vsel %vm141, %v204, 0
  %227 = vmatprep.subr.bf16.mxu0 0
  %228 = vmatpush1.bf16.msra.mxu0 %v217
  %229 = vmatprep.subr.bf16.mxu0 0
  %230 = vmatpush1.bf16.msra.mxu0 %v218
  %231 = vmatprep.subr.bf16.mxu0 0
  %232 = vmatpush1.bf16.msra.mxu0 0
  %233 = vmatprep.subr.bf16.mxu0 0
  %234 = vmatpush1.bf16.msra.mxu0 0
  %235 = vmatprep.subr.bf16.mxu0 0
  %236 = vmatpush1.bf16.msra.mxu0 0
  %237 = vmatprep.subr.bf16.mxu0 0
  %238 = vmatpush1.bf16.msra.mxu0 0
  %239 = vmatprep.subr.bf16.mxu0 0
  %240 = vmatpush1.bf16.msra.mxu0 0
  %241 = vmatprep.subr.bf16.mxu0 0
  %242 = vmatpush1.bf16.msra.mxu0 0
  %243 = vmatprep.subr.bf16.mxu0 0
  %244 = vmatpush1.bf16.msra.mxu0 0
  %245 = vmatprep.subr.bf16.mxu0 0
  %246 = vmatpush1.bf16.msra.mxu0 0
  %247 = vmatprep.subr.bf16.mxu0 0
  %248 = vmatpush1.bf16.msra.mxu0 0
  %249 = vmatprep.subr.bf16.mxu0 0
  %250 = vmatpush1.bf16.msra.mxu0 0
  %251 = vmatprep.subr.bf16.mxu0 0
  %252 = vmatpush1.bf16.msra.mxu0 0
  %253 = vmatprep.subr.bf16.mxu0 0
  %254 = vmatpush1.bf16.msra.mxu0 0
  %255 = vmatprep.subr.bf16.mxu0 0
  %256 = vmatpush1.bf16.msra.mxu0 0
  %257 = vmatprep.subr.bf16.mxu0 0
  %258 = vmatpush1.bf16.msra.mxu0 0
  %259 = vmatprep.mubr.bf16.mxu0 0
  %260 = vmatmul.mubr.bf16.gmra.mrb[0].mxu0 %v222
  %v261 = vpop.f32.mrb[0].mxu0
  %v262 = vadd.f32 %v40, %v261
  %v263 = vpop.f32.mrb[0].mxu0
  %v264 = vpop.f32.mrb[0].mxu0
  %v265 = vadd.f32 %v40, %v264
  %v266 = vpop.f32.mrb[0].mxu0
  %267 = vmatprep.mubr.bf16.mxu0 0
  %268 = vmatmul.mubr.bf16.gmra.mrb[0].mxu0 %v225
  %v269 = vpop.f32.mrb[0].mxu0
  %v270 = vadd.f32 %v40, %v269
  %v271 = vpop.f32.mrb[0].mxu0
  %v272 = vpop.f32.mrb[0].mxu0
  %v273 = vadd.f32 %v40, %v272
  %v274 = vpop.f32.mrb[0].mxu0
  %275 = vdwg.mxu0
  %v276 = vpack.c.bf16 %v265, %v262
  %v277 = vpack.c.bf16 %v273, %v270
  %279 = vrot.lane.b32.xlu0 %v276, 96
  %v280 = vpop.permute.xlu0 %279
  %vm281 = vcmask 130048
  %v283 = vsel %vm281, %v276, 0
  %v286 = vsel %vm281, %v280, 0
  %288 = vmatprep.subr.bf16.mxu0 0
  %289 = vmatpush1.bf16.xpose.msra.mxu0 %v286
  %290 = vmatprep.subr.bf16.mxu0 0
  %291 = vmatpush1.bf16.xpose.msra.mxu0 0
  %292 = vmatprep.subr.bf16.mxu0 0
  %293 = vmatpush1.bf16.xpose.msra.mxu0 0
  %294 = vmatprep.subr.bf16.mxu0 0
  %295 = vmatpush1.bf16.xpose.msra.mxu0 0
  %296 = vmatprep.subr.bf16.mxu0 0
  %297 = vmatpush1.bf16.xpose.msra.mxu0 0
  %298 = vmatprep.subr.bf16.mxu0 0
  %299 = vmatpush1.bf16.xpose.msra.mxu0 0
  %300 = vmatprep.subr.bf16.mxu0 0
  %301 = vmatpush1.bf16.xpose.msra.mxu0 0
  %302 = vmatprep.subr.bf16.mxu0 0
  %303 = vmatpush1.bf16.xpose.msra.mxu0 0
  %304 = vmatprep.subr.bf16.mxu0 0
  %305 = vmatpush1.bf16.xpose.msra.mxu0 0
  %306 = vmatprep.subr.bf16.mxu0 0
  %307 = vmatpush1.bf16.xpose.msra.mxu0 0
  %308 = vmatprep.subr.bf16.mxu0 0
  %309 = vmatpush1.bf16.xpose.msra.mxu0 0
  %310 = vmatprep.subr.bf16.mxu0 0
  %311 = vmatpush1.bf16.xpose.msra.mxu0 0
  %312 = vmatprep.subr.bf16.mxu0 0
  %313 = vmatpush1.bf16.xpose.msra.mxu0 0
  %314 = vmatprep.subr.bf16.mxu0 0
  %315 = vmatpush1.bf16.xpose.msra.mxu0 0
  %316 = vmatprep.subr.bf16.mxu0 0
  %317 = vmatpush1.bf16.xpose.msra.mxu0 0
  %318 = vmatprep.subr.bf16.mxu0 0
  %319 = vmatpush1.bf16.xpose.msra.mxu0 0
  %320 = vmatprep.mubr.bf16.mxu0 0
  %321 = vmatmul.mubr.bf16.gmra.mrb[0].mxu0 %v283
  %v322 = vpop.f32.mrb[0].mxu0
  %v323 = vadd.f32 0.0, %v322
  %v324 = vpop.f32.mrb[0].mxu0
  %v325 = vpop.f32.mrb[0].mxu0
  %v326 = vadd.f32 0.0, %v325
  %v327 = vpop.f32.mrb[0].mxu0
  %328 = vdwg.mxu0
  %330 = vrot.lane.b32.xlu0 %v277, 96
  %v331 = vpop.permute.xlu0 %330
  %v333 = vsel %vm281, %v277, 0
  %v336 = vsel %vm281, %v331, 0
  %338 = vmatprep.subr.bf16.mxu0 0
  %339 = vmatpush1.bf16.xpose.msra.mxu0 %v336
  %340 = vmatprep.subr.bf16.mxu0 0
  %341 = vmatpush1.bf16.xpose.msra.mxu0 0
  %342 = vmatprep.subr.bf16.mxu0 0
  %343 = vmatpush1.bf16.xpose.msra.mxu0 0
  %344 = vmatprep.subr.bf16.mxu0 0
  %345 = vmatpush1.bf16.xpose.msra.mxu0 0
  %346 = vmatprep.subr.bf16.mxu0 0
  %347 = vmatpush1.bf16.xpose.msra.mxu0 0
  %348 = vmatprep.subr.bf16.mxu0 0
  %349 = vmatpush1.bf16.xpose.msra.mxu0 0
  %350 = vmatprep.subr.bf16.mxu0 0
  %351 = vmatpush1.bf16.xpose.msra.mxu0 0
  %352 = vmatprep.subr.bf16.mxu0 0
  %353 = vmatpush1.bf16.xpose.msra.mxu0 0
  %354 = vmatprep.subr.bf16.mxu0 0
  %355 = vmatpush1.bf16.xpose.msra.mxu0 0
  %356 = vmatprep.subr.bf16.mxu0 0
  %357 = vmatpush1.bf16.xpose.msra.mxu0 0
  %358 = vmatprep.subr.bf16.mxu0 0
  %359 = vmatpush1.bf16.xpose.msra.mxu0 0
  %360 = vmatprep.subr.bf16.mxu0 0
  %361 = vmatpush1.bf16.xpose.msra.mxu0 0
  %362 = vmatprep.subr.bf16.mxu0 0
  %363 = vmatpush1.bf16.xpose.msra.mxu0 0
  %364 = vmatprep.subr.bf16.mxu0 0
  %365 = vmatpush1.bf16.xpose.msra.mxu0 0
  %366 = vmatprep.subr.bf16.mxu0 0
  %367 = vmatpush1.bf16.xpose.msra.mxu0 0
  %368 = vmatprep.subr.bf16.mxu0 0
  %369 = vmatpush1.bf16.xpose.msra.mxu0 0
  %370 = vmatprep.mubr.bf16.mxu0 0
  %371 = vmatmul.mubr.bf16.gmra.mrb[0].mxu0 %v333
  %v372 = vpop.f32.mrb[0].mxu0
  %v373 = vadd.f32 0.0, %v372
  %v374 = vpop.f32.mrb[0].mxu0
  %v375 = vpop.f32.mrb[0].mxu0
  %v376 = vadd.f32 0.0, %v375
  %v377 = vpop.f32.mrb[0].mxu0
  %378 = vdwg.mxu0
  %v379 = vsel %vm281, %v323, -inf
  %380 = vmax.xlane.f32.xlu0 %v379
  %v381 = vpop.xlane.xlu0 %380
  %v382 = vsel %vm281, %v326, -inf
  %383 = vmax.xlane.f32.xlu0 %v382
  %v384 = vpop.xlane.xlu0 %383
  %v385 = vsel %vm281, %v373, -inf
  %386 = vmax.xlane.f32.xlu0 %v385
  %v387 = vpop.xlane.xlu0 %386
  %v388 = vsel %vm281, %v376, -inf
  %389 = vmax.xlane.f32.xlu0 %v388
  %v390 = vpop.xlane.xlu0 %389
  %v391 = vsub.f32 %v323, %v381
  %v392 = vsub.f32 %v326, %v384
  %v393 = vsub.f32 %v373, %v387
  %v394 = vsub.f32 %v376, %v390
  %v395 = vmul.f32 %v391, 1.442695
  %v396 = vpow.pop %v395
  %v397 = vmul.f32 %v392, 1.442695
  %v398 = vpow.pop %v397
  %v399 = vmul.f32 %v393, 1.442695
  %v400 = vpow.pop %v399
  %v401 = vmul.f32 %v394, 1.442695
  %v402 = vpow.pop %v401
  %v403 = vsel %vm281, %v396, 0.0
  %404 = vadd.xlane.f32.xlu0 %v403
  %v405 = vpop.xlane.xlu0 %404
  %v406 = vsel %vm281, %v398, 0.0
  %407 = vadd.xlane.f32.xlu0 %v406
  %v408 = vpop.xlane.xlu0 %407
  %v409 = vsel %vm281, %v400, 0.0
  %410 = vadd.xlane.f32.xlu0 %v409
  %v411 = vpop.xlane.xlu0 %410
  %v412 = vsel %vm281, %v402, 0.0
  %413 = vadd.xlane.f32.xlu0 %v412
  %v414 = vpop.xlane.xlu0 %413
  %v415 = vrcp.pop %v405
  %v416 = vmul.f32 %v396, %v415
  %v417 = vrcp.pop %v408
  %v418 = vmul.f32 %v398, %v417
  %v419 = vrcp.pop %v411
  %v420 = vmul.f32 %v400, %v419
  %v421 = vrcp.pop %v414
  %v422 = vmul.f32 %v402, %v421
  %v423 = vpack.c.bf16 %v418, %v416
  %v424 = vpack.c.bf16 %v422, %v420
  %425 = vrot.lane.b32.xlu0 %v276, 64
  %v426 = vpop.permute.xlu0 %425
  %v429 = vsel %vm281, %v423, 0
  %431 = vmatprep.subr.bf16.mxu0 0
  %432 = vmatpush1.bf16.msra.mxu0 %v426
  %433 = vmatprep.subr.bf16.mxu0 0
  %434 = vmatpush1.bf16.msra.mxu0 0
  %435 = vmatprep.subr.bf16.mxu0 0
  %436 = vmatpush1.bf16.msra.mxu0 0
  %437 = vmatprep.subr.bf16.mxu0 0
  %438 = vmatpush1.bf16.msra.mxu0 0
  %439 = vmatprep.subr.bf16.mxu0 0
  %440 = vmatpush1.bf16.msra.mxu0 0
  %441 = vmatprep.subr.bf16.mxu0 0
  %442 = vmatpush1.bf16.msra.mxu0 0
  %443 = vmatprep.subr.bf16.mxu0 0
  %444 = vmatpush1.bf16.msra.mxu0 0
  %445 = vmatprep.subr.bf16.mxu0 0
  %446 = vmatpush1.bf16.msra.mxu0 0
  %447 = vmatprep.subr.bf16.mxu0 0
  %448 = vmatpush1.bf16.msra.mxu0 0
  %449 = vmatprep.subr.bf16.mxu0 0
  %450 = vmatpush1.bf16.msra.mxu0 0
  %451 = vmatprep.subr.bf16.mxu0 0
  %452 = vmatpush1.bf16.msra.mxu0 0
  %453 = vmatprep.subr.bf16.mxu0 0
  %454 = vmatpush1.bf16.msra.mxu0 0
  %455 = vmatprep.subr.bf16.mxu0 0
  %456 = vmatpush1.bf16.msra.mxu0 0
  %457 = vmatprep.subr.bf16.mxu0 0
  %458 = vmatpush1.bf16.msra.mxu0 0
  %459 = vmatprep.subr.bf16.mxu0 0
  %460 = vmatpush1.bf16.msra.mxu0 0
  %461 = vmatprep.subr.bf16.mxu0 0
  %462 = vmatpush1.bf16.msra.mxu0 0
  %463 = vmatprep.mubr.bf16.mxu0 0
  %464 = vmatmul.mubr.bf16.gmra.mrb[0].mxu0 %v429
  %v465 = vpop.f32.mrb[0].mxu0
  %v466 = vadd.f32 0.0, %v465
  %v467 = vpop.f32.mrb[0].mxu0
  %v468 = vpop.f32.mrb[0].mxu0
  %v469 = vadd.f32 0.0, %v468
  %v470 = vpop.f32.mrb[0].mxu0
  %471 = vdwg.mxu0
  %472 = vrot.lane.b32.xlu0 %v277, 64
  %v473 = vpop.permute.xlu0 %472
  %v476 = vsel %vm281, %v424, 0
  %478 = vmatprep.subr.bf16.mxu0 0
  %479 = vmatpush1.bf16.msra.mxu0 %v473
  %480 = vmatprep.subr.bf16.mxu0 0
  %481 = vmatpush1.bf16.msra.mxu0 0
  %482 = vmatprep.subr.bf16.mxu0 0
  %483 = vmatpush1.bf16.msra.mxu0 0
  %484 = vmatprep.subr.bf16.mxu0 0
  %485 = vmatpush1.bf16.msra.mxu0 0
  %486 = vmatprep.subr.bf16.mxu0 0
  %487 = vmatpush1.bf16.msra.mxu0 0
  %488 = vmatprep.subr.bf16.mxu0 0
  %489 = vmatpush1.bf16.msra.mxu0 0
  %490 = vmatprep.subr.bf16.mxu0 0
  %491 = vmatpush1.bf16.msra.mxu0 0
  %492 = vmatprep.subr.bf16.mxu0 0
  %493 = vmatpush1.bf16.msra.mxu0 0
  %494 = vmatprep.subr.bf16.mxu0 0
  %495 = vmatpush1.bf16.msra.mxu0 0
  %496 = vmatprep.subr.bf16.mxu0 0
  %497 = vmatpush1.bf16.msra.mxu0 0
  %498 = vmatprep.subr.bf16.mxu0 0
  %499 = vmatpush1.bf16.msra.mxu0 0
  %500 = vmatprep.subr.bf16.mxu0 0
  %501 = vmatpush1.bf16.msra.mxu0 0
  %502 = vmatprep.subr.bf16.mxu0 0
  %503 = vmatpush1.bf16.msra.mxu0 0
  %504 = vmatprep.subr.bf16.mxu0 0
  %505 = vmatpush1.bf16.msra.mxu0 0
  %506 = vmatprep.subr.bf16.mxu0 0
  %507 = vmatpush1.bf16.msra.mxu0 0
  %508 = vmatprep.subr.bf16.mxu0 0
  %509 = vmatpush1.bf16.msra.mxu0 0
  %510 = vmatprep.mubr.bf16.mxu0 0
  %511 = vmatmul.mubr.bf16.gmra.mrb[0].mxu0 %v476
  %v512 = vpop.f32.mrb[0].mxu0
  %v513 = vadd.f32 0.0, %v512
  %v514 = vpop.f32.mrb[0].mxu0
  %v515 = vpop.f32.mrb[0].mxu0
  %v516 = vadd.f32 0.0, %v515
  %v517 = vpop.f32.mrb[0].mxu0
  %518 = vdwg.mxu0
  %v519 = vpack.c.bf16 %v469, %v466
  %v520 = vpack.c.bf16 %v516, %v513
  %v521 = vld [vmem:[%s4] sm:$0xf]
  %v522 = vld [vmem:[%s4 + $0x4] sm:$0xf]
  %523 = vrot.lane.b32.xlu0 %v276, 112
  %v524 = vpop.permute.xlu0 %523
  %525 = vrot.lane.b32.xlu0 %v276, 80
  %v526 = vpop.permute.xlu0 %525
  %v528 = vsel %vm281, %v524, 0
  %v531 = vsel %vm281, %v526, 0
  %533 = vmatprep.subr.bf16.mxu0 0
  %534 = vmatpush1.bf16.xpose.msra.mxu0 %v531
  %535 = vmatprep.subr.bf16.mxu0 0
  %536 = vmatpush1.bf16.xpose.msra.mxu0 0
  %537 = vmatprep.subr.bf16.mxu0 0
  %538 = vmatpush1.bf16.xpose.msra.mxu0 0
  %539 = vmatprep.subr.bf16.mxu0 0
  %540 = vmatpush1.bf16.xpose.msra.mxu0 0
  %541 = vmatprep.subr.bf16.mxu0 0
  %542 = vmatpush1.bf16.xpose.msra.mxu0 0
  %543 = vmatprep.subr.bf16.mxu0 0
  %544 = vmatpush1.bf16.xpose.msra.mxu0 0
  %545 = vmatprep.subr.bf16.mxu0 0
  %546 = vmatpush1.bf16.xpose.msra.mxu0 0
  %547 = vmatprep.subr.bf16.mxu0 0
  %548 = vmatpush1.bf16.xpose.msra.mxu0 0
  %549 = vmatprep.subr.bf16.mxu0 0
  %550 = vmatpush1.bf16.xpose.msra.mxu0 0
  %551 = vmatprep.subr.bf16.mxu0 0
  %552 = vmatpush1.bf16.xpose.msra.mxu0 0
  %553 = vmatprep.subr.bf16.mxu0 0
  %554 = vmatpush1.bf16.xpose.msra.mxu0 0
  %555 = vmatprep.subr.bf16.mxu0 0
  %556 = vmatpush1.bf16.xpose.msra.mxu0 0
  %557 = vmatprep.subr.bf16.mxu0 0
  %558 = vmatpush1.bf16.xpose.msra.mxu0 0
  %559 = vmatprep.subr.bf16.mxu0 0
  %560 = vmatpush1.bf16.xpose.msra.mxu0 0
  %561 = vmatprep.subr.bf16.mxu0 0
  %562 = vmatpush1.bf16.xpose.msra.mxu0 0
  %563 = vmatprep.subr.bf16.mxu0 0
  %564 = vmatpush1.bf16.xpose.msra.mxu0 0
  %565 = vmatprep.mubr.bf16.mxu0 0
  %566 = vmatmul.mubr.bf16.gmra.mrb[0].mxu0 %v528
  %v567 = vpop.f32.mrb[0].mxu0
  %v568 = vadd.f32 0.0, %v567
  %v569 = vpop.f32.mrb[0].mxu0
  %v570 = vpop.f32.mrb[0].mxu0
  %v571 = vadd.f32 0.0, %v570
  %v572 = vpop.f32.mrb[0].mxu0
  %573 = vdwg.mxu0
  %574 = vrot.lane.b32.xlu0 %v277, 112
  %v575 = vpop.permute.xlu0 %574
  %576 = vrot.lane.b32.xlu0 %v277, 80
  %v577 = vpop.permute.xlu0 %576
  %v579 = vsel %vm281, %v575, 0
  %v582 = vsel %vm281, %v577, 0
  %584 = vmatprep.subr.bf16.mxu0 0
  %585 = vmatpush1.bf16.xpose.msra.mxu0 %v582
  %586 = vmatprep.subr.bf16.mxu0 0
  %587 = vmatpush1.bf16.xpose.msra.mxu0 0
  %588 = vmatprep.subr.bf16.mxu0 0
  %589 = vmatpush1.bf16.xpose.msra.mxu0 0
  %590 = vmatprep.subr.bf16.mxu0 0
  %591 = vmatpush1.bf16.xpose.msra.mxu0 0
  %592 = vmatprep.subr.bf16.mxu0 0
  %593 = vmatpush1.bf16.xpose.msra.mxu0 0
  %594 = vmatprep.subr.bf16.mxu0 0
  %595 = vmatpush1.bf16.xpose.msra.mxu0 0
  %596 = vmatprep.subr.bf16.mxu0 0
  %597 = vmatpush1.bf16.xpose.msra.mxu0 0
  %598 = vmatprep.subr.bf16.mxu0 0
  %599 = vmatpush1.bf16.xpose.msra.mxu0 0
  %600 = vmatprep.subr.bf16.mxu0 0
  %601 = vmatpush1.bf16.xpose.msra.mxu0 0
  %602 = vmatprep.subr.bf16.mxu0 0
  %603 = vmatpush1.bf16.xpose.msra.mxu0 0
  %604 = vmatprep.subr.bf16.mxu0 0
  %605 = vmatpush1.bf16.xpose.msra.mxu0 0
  %606 = vmatprep.subr.bf16.mxu0 0
  %607 = vmatpush1.bf16.xpose.msra.mxu0 0
  %608 = vmatprep.subr.bf16.mxu0 0
  %609 = vmatpush1.bf16.xpose.msra.mxu0 0
  %610 = vmatprep.subr.bf16.mxu0 0
  %611 = vmatpush1.bf16.xpose.msra.mxu0 0
  %612 = vmatprep.subr.bf16.mxu0 0
  %613 = vmatpush1.bf16.xpose.msra.mxu0 0
  %614 = vmatprep.subr.bf16.mxu0 0
  %615 = vmatpush1.bf16.xpose.msra.mxu0 0
  %616 = vmatprep.mubr.bf16.mxu0 0
  %617 = vmatmul.mubr.bf16.gmra.mrb[0].mxu0 %v579
  %v618 = vpop.f32.mrb[0].mxu0
  %v619 = vadd.f32 0.0, %v618
  %v620 = vpop.f32.mrb[0].mxu0
  %v621 = vpop.f32.mrb[0].mxu0
  %v622 = vadd.f32 0.0, %v621
  %v623 = vpop.f32.mrb[0].mxu0
  %624 = vdwg.mxu0
  %v625 = vsel %vm281, %v568, -inf
  %626 = vmax.xlane.f32.xlu0 %v625
  %v627 = vpop.xlane.xlu0 %626
  %v628 = vsel %vm281, %v571, -inf
  %629 = vmax.xlane.f32.xlu0 %v628
  %v630 = vpop.xlane.xlu0 %629
  %v631 = vsel %vm281, %v619, -inf
  %632 = vmax.xlane.f32.xlu0 %v631
  %v633 = vpop.xlane.xlu0 %632
  %v634 = vsel %vm281, %v622, -inf
  %635 = vmax.xlane.f32.xlu0 %v634
  %v636 = vpop.xlane.xlu0 %635
  %v637 = vsub.f32 %v568, %v627
  %v638 = vsub.f32 %v571, %v630
  %v639 = vsub.f32 %v619, %v633
  %v640 = vsub.f32 %v622, %v636
  %v641 = vmul.f32 %v637, 1.442695
  %v642 = vpow.pop %v641
  %v643 = vmul.f32 %v638, 1.442695
  %v644 = vpow.pop %v643
  %v645 = vmul.f32 %v639, 1.442695
  %v646 = vpow.pop %v645
  %v647 = vmul.f32 %v640, 1.442695
  %v648 = vpow.pop %v647
  %v649 = vsel %vm281, %v642, 0.0
  %650 = vadd.xlane.f32.xlu0 %v649
  %v651 = vpop.xlane.xlu0 %650
  %v652 = vsel %vm281, %v644, 0.0
  %653 = vadd.xlane.f32.xlu0 %v652
  %v654 = vpop.xlane.xlu0 %653
  %v655 = vsel %vm281, %v646, 0.0
  %656 = vadd.xlane.f32.xlu0 %v655
  %v657 = vpop.xlane.xlu0 %656
  %v658 = vsel %vm281, %v648, 0.0
  %659 = vadd.xlane.f32.xlu0 %v658
  %v660 = vpop.xlane.xlu0 %659
  %v661 = vrcp.pop %v651
  %v662 = vmul.f32 %v642, %v661
  %v663 = vrcp.pop %v654
  %v664 = vmul.f32 %v644, %v663
  %v665 = vrcp.pop %v657
  %v666 = vmul.f32 %v646, %v665
  %v667 = vrcp.pop %v660
  %v668 = vmul.f32 %v648, %v667
  %v669 = vpack.c.bf16 %v664, %v662
  %v670 = vpack.c.bf16 %v668, %v666
  %671 = vrot.lane.b32.xlu0 %v276, 48
  %v672 = vpop.permute.xlu0 %671
  %v675 = vsel %vm281, %v669, 0
  %677 = vmatprep.subr.bf16.mxu0 0
  %678 = vmatpush1.bf16.msra.mxu0 %v672
  %679 = vmatprep.subr.bf16.mxu0 0
  %680 = vmatpush1.bf16.msra.mxu0 0
  %681 = vmatprep.subr.bf16.mxu0 0
  %682 = vmatpush1.bf16.msra.mxu0 0
  %683 = vmatprep.subr.bf16.mxu0 0
  %684 = vmatpush1.bf16.msra.mxu0 0
  %685 = vmatprep.subr.bf16.mxu0 0
  %686 = vmatpush1.bf16.msra.mxu0 0
  %687 = vmatprep.subr.bf16.mxu0 0
  %688 = vmatpush1.bf16.msra.mxu0 0
  %689 = vmatprep.subr.bf16.mxu0 0
  %690 = vmatpush1.bf16.msra.mxu0 0
  %691 = vmatprep.subr.bf16.mxu0 0
  %692 = vmatpush1.bf16.msra.mxu0 0
  %693 = vmatprep.subr.bf16.mxu0 0
  %694 = vmatpush1.bf16.msra.mxu0 0
  %695 = vmatprep.subr.bf16.mxu0 0
  %696 = vmatpush1.bf16.msra.mxu0 0
  %697 = vmatprep.subr.bf16.mxu0 0
  %698 = vmatpush1.bf16.msra.mxu0 0
  %699 = vmatprep.subr.bf16.mxu0 0
  %700 = vmatpush1.bf16.msra.mxu0 0
  %701 = vmatprep.subr.bf16.mxu0 0
  %702 = vmatpush1.bf16.msra.mxu0 0
  %703 = vmatprep.subr.bf16.mxu0 0
  %704 = vmatpush1.bf16.msra.mxu0 0
  %705 = vmatprep.subr.bf16.mxu0 0
  %706 = vmatpush1.bf16.msra.mxu0 0
  %707 = vmatprep.subr.bf16.mxu0 0
  %708 = vmatpush1.bf16.msra.mxu0 0
  %709 = vmatprep.mubr.bf16.mxu0 0
  %710 = vmatmul.mubr.bf16.gmra.mrb[0].mxu0 %v675
  %v711 = vpop.f32.mrb[0].mxu0
  %v712 = vadd.f32 0.0, %v711
  %v713 = vpop.f32.mrb[0].mxu0
  %v714 = vpop.f32.mrb[0].mxu0
  %v715 = vadd.f32 0.0, %v714
  %v716 = vpop.f32.mrb[0].mxu0
  %717 = vdwg.mxu0
  %718 = vrot.lane.b32.xlu0 %v277, 48
  %v719 = vpop.permute.xlu0 %718
  %v722 = vsel %vm281, %v670, 0
  %724 = vmatprep.subr.bf16.mxu0 0
  %725 = vmatpush1.bf16.msra.mxu0 %v719
  %726 = vmatprep.subr.bf16.mxu0 0
  %727 = vmatpush1.bf16.msra.mxu0 0
  %728 = vmatprep.subr.bf16.mxu0 0
  %729 = vmatpush1.bf16.msra.mxu0 0
  %730 = vmatprep.subr.bf16.mxu0 0
  %731 = vmatpush1.bf16.msra.mxu0 0
  %732 = vmatprep.subr.bf16.mxu0 0
  %733 = vmatpush1.bf16.msra.mxu0 0
  %734 = vmatprep.subr.bf16.mxu0 0
  %735 = vmatpush1.bf16.msra.mxu0 0
  %736 = vmatprep.subr.bf16.mxu0 0
  %737 = vmatpush1.bf16.msra.mxu0 0
  %738 = vmatprep.subr.bf16.mxu0 0
  %739 = vmatpush1.bf16.msra.mxu0 0
  %740 = vmatprep.subr.bf16.mxu0 0
  %741 = vmatpush1.bf16.msra.mxu0 0
  %742 = vmatprep.subr.bf16.mxu0 0
  %743 = vmatpush1.bf16.msra.mxu0 0
  %744 = vmatprep.subr.bf16.mxu0 0
  %745 = vmatpush1.bf16.msra.mxu0 0
  %746 = vmatprep.subr.bf16.mxu0 0
  %747 = vmatpush1.bf16.msra.mxu0 0
  %748 = vmatprep.subr.bf16.mxu0 0
  %749 = vmatpush1.bf16.msra.mxu0 0
  %750 = vmatprep.subr.bf16.mxu0 0
  %751 = vmatpush1.bf16.msra.mxu0 0
  %752 = vmatprep.subr.bf16.mxu0 0
  %753 = vmatpush1.bf16.msra.mxu0 0
  %754 = vmatprep.subr.bf16.mxu0 0
  %755 = vmatpush1.bf16.msra.mxu0 0
  %756 = vmatprep.mubr.bf16.mxu0 0
  %757 = vmatmul.mubr.bf16.gmra.mrb[0].mxu0 %v722
  %v758 = vpop.f32.mrb[0].mxu0
  %v759 = vadd.f32 0.0, %v758
  %v760 = vpop.f32.mrb[0].mxu0
  %v761 = vpop.f32.mrb[0].mxu0
  %v762 = vadd.f32 0.0, %v761
  %v763 = vpop.f32.mrb[0].mxu0
  %764 = vdwg.mxu0
  %v765 = vpack.c.bf16 %v715, %v712
  %v766 = vpack.c.bf16 %v762, %v759
  %v767 = vld [vmem:[%s4 + $0x8] sm:$0xf]
  %v768 = vld [vmem:[%s4 + $0xc] sm:$0xf]
  %v771 = vunpack.c.l.b16 %v767
  %v772 = vunpack.c.l.b16 %v768
  %v773 = vpack.c.b16 %v772, %v771
  %v776 = vsel %vm281, %v765, 0
  %v779 = vsel %vm281, %v766, 0
  %781 = vmatprep.subr.bf16.mxu0 0
  %782 = vmatpush1.bf16.msra.mxu0 %v773
  %783 = vmatprep.subr.bf16.mxu0 0
  %784 = vmatpush1.bf16.msra.mxu0 0
  %785 = vmatprep.subr.bf16.mxu0 0
  %786 = vmatpush1.bf16.msra.mxu0 0
  %787 = vmatprep.subr.bf16.mxu0 0
  %788 = vmatpush1.bf16.msra.mxu0 0
  %789 = vmatprep.subr.bf16.mxu0 0
  %790 = vmatpush1.bf16.msra.mxu0 0
  %791 = vmatprep.subr.bf16.mxu0 0
  %792 = vmatpush1.bf16.msra.mxu0 0
  %793 = vmatprep.subr.bf16.mxu0 0
  %794 = vmatpush1.bf16.msra.mxu0 0
  %795 = vmatprep.subr.bf16.mxu0 0
  %796 = vmatpush1.bf16.msra.mxu0 0
  %797 = vmatprep.subr.bf16.mxu0 0
  %798 = vmatpush1.bf16.msra.mxu0 0
  %799 = vmatprep.subr.bf16.mxu0 0
  %800 = vmatpush1.bf16.msra.mxu0 0
  %801 = vmatprep.subr.bf16.mxu0 0
  %802 = vmatpush1.bf16.msra.mxu0 0
  %803 = vmatprep.subr.bf16.mxu0 0
  %804 = vmatpush1.bf16.msra.mxu0 0
  %805 = vmatprep.subr.bf16.mxu0 0
  %806 = vmatpush1.bf16.msra.mxu0 0
  %807 = vmatprep.subr.bf16.mxu0 0
  %808 = vmatpush1.bf16.msra.mxu0 0
  %809 = vmatprep.subr.bf16.mxu0 0
  %810 = vmatpush1.bf16.msra.mxu0 0
  %811 = vmatprep.subr.bf16.mxu0 0
  %812 = vmatpush1.bf16.msra.mxu0 0
  %813 = vmatprep.mubr.bf16.mxu0 0
  %814 = vmatmul.mubr.bf16.gmra.mrb[0].mxu0 %v776
  %v815 = vpop.f32.mrb[0].mxu0
  %v816 = vadd.f32 0.0, %v815
  %v817 = vpop.f32.mrb[0].mxu0
  %v818 = vpop.f32.mrb[0].mxu0
  %v819 = vadd.f32 0.0, %v818
  %v820 = vpop.f32.mrb[0].mxu0
  %821 = vmatprep.mubr.bf16.mxu0 0
  %822 = vmatmul.mubr.bf16.gmra.mrb[0].mxu0 %v779
  %v823 = vpop.f32.mrb[0].mxu0
  %v824 = vadd.f32 0.0, %v823
  %v825 = vpop.f32.mrb[0].mxu0
  %v826 = vpop.f32.mrb[0].mxu0
  %v827 = vadd.f32 0.0, %v826
  %v828 = vpop.f32.mrb[0].mxu0
  %829 = vdwg.mxu0
  %v832 = vunpack.c.l.b16 %v521
  %v833 = vunpack.c.l.b16 %v522
  %v834 = vpack.c.b16 %v833, %v832
  %v837 = vsel %vm281, %v519, 0
  %v840 = vsel %vm281, %v520, 0
  %842 = vmatprep.subr.bf16.mxu0 0
  %843 = vmatpush1.bf16.msra.mxu0 %v834
  %844 = vmatprep.subr.bf16.mxu0 0
  %845 = vmatpush1.bf16.msra.mxu0 0
  %846 = vmatprep.subr.bf16.mxu0 0
  %847 = vmatpush1.bf16.msra.mxu0 0
  %848 = vmatprep.subr.bf16.mxu0 0
  %849 = vmatpush1.bf16.msra.mxu0 0
  %850 = vmatprep.subr.bf16.mxu0 0
  %851 = vmatpush1.bf16.msra.mxu0 0
  %852 = vmatprep.subr.bf16.mxu0 0
  %853 = vmatpush1.bf16.msra.mxu0 0
  %854 = vmatprep.subr.bf16.mxu0 0
  %855 = vmatpush1.bf16.msra.mxu0 0
  %856 = vmatprep.subr.bf16.mxu0 0
  %857 = vmatpush1.bf16.msra.mxu0 0
  %858 = vmatprep.subr.bf16.mxu0 0
  %859 = vmatpush1.bf16.msra.mxu0 0
  %860 = vmatprep.subr.bf16.mxu0 0
  %861 = vmatpush1.bf16.msra.mxu0 0
  %862 = vmatprep.subr.bf16.mxu0 0
  %863 = vmatpush1.bf16.msra.mxu0 0
  %864 = vmatprep.subr.bf16.mxu0 0
  %865 = vmatpush1.bf16.msra.mxu0 0
  %866 = vmatprep.subr.bf16.mxu0 0
  %867 = vmatpush1.bf16.msra.mxu0 0
  %868 = vmatprep.subr.bf16.mxu0 0
  %869 = vmatpush1.bf16.msra.mxu0 0
  %870 = vmatprep.subr.bf16.mxu0 0
  %871 = vmatpush1.bf16.msra.mxu0 0
  %872 = vmatprep.subr.bf16.mxu0 0
  %873 = vmatpush1.bf16.msra.mxu0 0
  %874 = vmatprep.mubr.bf16.mxu0 0
  %875 = vmatmul.mubr.bf16.gmra.mrb[0].mxu0 %v837
  %v876 = vpop.f32.mrb[0].mxu0
  %v877 = vadd.f32 %v816, %v876
  %v878 = vpop.f32.mrb[0].mxu0
  %v879 = vpop.f32.mrb[0].mxu0
  %v880 = vadd.f32 %v819, %v879
  %v881 = vpop.f32.mrb[0].mxu0
  %882 = vmatprep.mubr.bf16.mxu0 0
  %883 = vmatmul.mubr.bf16.gmra.mrb[0].mxu0 %v840
  %v884 = vpop.f32.mrb[0].mxu0
  %v885 = vadd.f32 %v824, %v884
  %v886 = vpop.f32.mrb[0].mxu0
  %v887 = vpop.f32.mrb[0].mxu0
  %v888 = vadd.f32 %v827, %v887
  %v889 = vpop.f32.mrb[0].mxu0
  %890 = vdwg.mxu0
  %v891 = vadd.f32 %v127, %v877
  %v892 = vadd.f32 %v130, %v880
  %v893 = vadd.f32 %v135, %v885
  %v894 = vadd.f32 %v138, %v888
  %v895 = vadd.f32 %v891, %v37
  %v896 = vadd.f32 %v892, %v37
  %v897 = vadd.f32 %v893, %v37
  %v898 = vadd.f32 %v894, %v37
  %v899 = vsel %vm141, %v895, 0.0
  %900 = vadd.xlane.f32.xlu0 %v899
  %v901 = vpop.xlane.xlu0 %900
  %v902 = vsel %vm141, %v896, 0.0
  %903 = vadd.xlane.f32.xlu0 %v902
  %v904 = vpop.xlane.xlu0 %903
  %v905 = vsel %vm141, %v897, 0.0
  %906 = vadd.xlane.f32.xlu0 %v905
  %v907 = vpop.xlane.xlu0 %906
  %v908 = vsel %vm141, %v898, 0.0
  %909 = vadd.xlane.f32.xlu0 %v908
  %v910 = vpop.xlane.xlu0 %909
  %v911 = vmul.f32 %v901, %v154
  %v912 = vmul.f32 %v904, %v154
  %v913 = vmul.f32 %v907, %v154
  %v914 = vmul.f32 %v910, %v154
  %v915 = vsub.f32 %v895, %v911
  %v916 = vsub.f32 %v896, %v912
  %v917 = vsub.f32 %v897, %v913
  %v918 = vsub.f32 %v898, %v914
  %v919 = vmul.f32 %v915, %v915
  %v920 = vmul.f32 %v916, %v916
  %v921 = vmul.f32 %v917, %v917
  %v922 = vmul.f32 %v918, %v918
  %v923 = vsel %vm141, %v919, 0.0
  %924 = vadd.xlane.f32.xlu0 %v923
  %v925 = vpop.xlane.xlu0 %924
  %v926 = vsel %vm141, %v920, 0.0
  %927 = vadd.xlane.f32.xlu0 %v926
  %v928 = vpop.xlane.xlu0 %927
  %v929 = vsel %vm141, %v921, 0.0
  %930 = vadd.xlane.f32.xlu0 %v929
  %v931 = vpop.xlane.xlu0 %930
  %v932 = vsel %vm141, %v922, 0.0
  %933 = vadd.xlane.f32.xlu0 %v932
  %v934 = vpop.xlane.xlu0 %933
  %v935 = vmul.f32 %v925, %v154
  %v936 = vmul.f32 %v928, %v154
  %v937 = vmul.f32 %v931, %v154
  %v938 = vmul.f32 %v934, %v154
  %v939 = vadd.f32 %v935, 1e-05
  %v940 = vadd.f32 %v936, 1e-05
  %v941 = vadd.f32 %v937, 1e-05
  %v942 = vadd.f32 %v938, 1e-05
  %v943 = vrsqrt.pop %v939
  %v944 = vrsqrt.pop %v940
  %v945 = vrsqrt.pop %v941
  %v946 = vrsqrt.pop %v942
  %v947 = vmul.f32 %v915, %v943
  %v948 = vmul.f32 %v916, %v944
  %v949 = vmul.f32 %v917, %v945
  %v950 = vmul.f32 %v918, %v946
  %v951 = vmul.f32 %v947, %v35
  %v952 = vmul.f32 %v948, %v35
  %v953 = vmul.f32 %v949, %v35
  %v954 = vmul.f32 %v950, %v35
  %v955 = vadd.f32 %v951, %v36
  %v956 = vadd.f32 %v952, %v36
  %v957 = vadd.f32 %v953, %v36
  %v958 = vadd.f32 %v954, %v36
  %v959 = vpack.c.bf16 %v956, %v955
  %v960 = vpack.c.bf16 %v958, %v957
  %v961 = vld [vmem:[%s5] sm:$0xf]
  %v962 = vld [vmem:[%s5 + $0x4] sm:$0xf]
  %v963 = vld [vmem:[%s5 + $0x8] sm:$0xf]
  %v964 = vld [vmem:[%s5 + $0xc] sm:$0xf]
  %v969 = vunpack.c.l.b16 %v961
  %v970 = vunpack.c.l.b16 %v962
  %v971 = vunpack.c.l.b16 %v963
  %v972 = vunpack.c.l.b16 %v964
  %v973 = vpack.c.b16 %v970, %v969
  %v974 = vpack.c.b16 %v972, %v971
  %v978 = vsel %vm141, %v959, 0
  %v981 = vsel %vm141, %v960, 0
  %983 = vmatprep.subr.bf16.mxu0 0
  %984 = vmatpush1.bf16.msra.mxu0 %v973
  %985 = vmatprep.subr.bf16.mxu0 0
  %986 = vmatpush1.bf16.msra.mxu0 %v974
  %987 = vmatprep.subr.bf16.mxu0 0
  %988 = vmatpush1.bf16.msra.mxu0 0
  %989 = vmatprep.subr.bf16.mxu0 0
  %990 = vmatpush1.bf16.msra.mxu0 0
  %991 = vmatprep.subr.bf16.mxu0 0
  %992 = vmatpush1.bf16.msra.mxu0 0
  %993 = vmatprep.subr.bf16.mxu0 0
  %994 = vmatpush1.bf16.msra.mxu0 0
  %995 = vmatprep.subr.bf16.mxu0 0
  %996 = vmatpush1.bf16.msra.mxu0 0
  %997 = vmatprep.subr.bf16.mxu0 0
  %998 = vmatpush1.bf16.msra.mxu0 0
  %999 = vmatprep.subr.bf16.mxu0 0
  %1000 = vmatpush1.bf16.msra.mxu0 0
  %1001 = vmatprep.subr.bf16.mxu0 0
  %1002 = vmatpush1.bf16.msra.mxu0 0
  %1003 = vmatprep.subr.bf16.mxu0 0
  %1004 = vmatpush1.bf16.msra.mxu0 0
  %1005 = vmatprep.subr.bf16.mxu0 0
  %1006 = vmatpush1.bf16.msra.mxu0 0
  %1007 = vmatprep.subr.bf16.mxu0 0
  %1008 = vmatpush1.bf16.msra.mxu0 0
  %1009 = vmatprep.subr.bf16.mxu0 0
  %1010 = vmatpush1.bf16.msra.mxu0 0
  %1011 = vmatprep.subr.bf16.mxu0 0
  %1012 = vmatpush1.bf16.msra.mxu0 0
  %1013 = vmatprep.subr.bf16.mxu0 0
  %1014 = vmatpush1.bf16.msra.mxu0 0
  %1015 = vmatprep.mubr.bf16.mxu0 0
  %1016 = vmatmul.mubr.bf16.gmra.mrb[0].mxu0 %v978
  %v1017 = vpop.f32.mrb[0].mxu0
  %v1018 = vadd.f32 %v39, %v1017
  %v1019 = vpop.f32.mrb[0].mxu0
  %v1020 = vpop.f32.mrb[0].mxu0
  %v1021 = vadd.f32 %v39, %v1020
  %v1022 = vpop.f32.mrb[0].mxu0
  %1023 = vmatprep.mubr.bf16.mxu0 0
  %1024 = vmatmul.mubr.bf16.gmra.mrb[0].mxu0 %v981
  %v1025 = vpop.f32.mrb[0].mxu0
  %v1026 = vadd.f32 %v39, %v1025
  %v1027 = vpop.f32.mrb[0].mxu0
  %v1028 = vpop.f32.mrb[0].mxu0
  %v1029 = vadd.f32 %v39, %v1028
  %v1030 = vpop.f32.mrb[0].mxu0
  %1031 = vdwg.mxu0
  %v1032 = vmul.f32 %v1018, %v1018
  %v1033 = vmul.f32 %v1021, %v1021
  %v1034 = vmul.f32 %v1026, %v1026
  %v1035 = vmul.f32 %v1029, %v1029
  %v1036 = vmul.f32 %v1018, %v1032
  %v1037 = vmul.f32 %v1021, %v1033
  %v1038 = vmul.f32 %v1026, %v1034
  %v1039 = vmul.f32 %v1029, %v1035
  %v1040 = vmul.f32 %v1036, 0.044715
  %v1041 = vmul.f32 %v1037, 0.044715
  %v1042 = vmul.f32 %v1038, 0.044715
  %v1043 = vmul.f32 %v1039, 0.044715
  %v1044 = vadd.f32 %v1018, %v1040
  %v1045 = vadd.f32 %v1021, %v1041
  %v1046 = vadd.f32 %v1026, %v1042
  %v1047 = vadd.f32 %v1029, %v1043
  %v1048 = vmul.f32 %v1044, 0.7978846
  %v1049 = vmul.f32 %v1045, 0.7978846
  %v1050 = vmul.f32 %v1046, 0.7978846
  %v1051 = vmul.f32 %v1047, 0.7978846
  %v1052 = vtanh.pop %v1048
  %v1053 = vtanh.pop %v1049
  %v1054 = vtanh.pop %v1050
  %v1055 = vtanh.pop %v1051
  %v1056 = vadd.f32 %v1052, 1.0
  %v1057 = vadd.f32 %v1053, 1.0
  %v1058 = vadd.f32 %v1054, 1.0
  %v1059 = vadd.f32 %v1055, 1.0
  %v1060 = vmul.f32 %v1056, 0.5
  %v1061 = vmul.f32 %v1057, 0.5
  %v1062 = vmul.f32 %v1058, 0.5
  %v1063 = vmul.f32 %v1059, 0.5
  %v1064 = vmul.f32 %v1018, %v1060
  %v1065 = vmul.f32 %v1021, %v1061
  %v1066 = vmul.f32 %v1026, %v1062
  %v1067 = vmul.f32 %v1029, %v1063
  %v1068 = vpack.c.bf16 %v1065, %v1064
  %v1069 = vpack.c.bf16 %v1067, %v1066
  %v1070 = vld [vmem:[%s6] sm:$0xf]
  %v1071 = vld [vmem:[%s6 + $0x4] sm:$0xf]
  %v1072 = vld [vmem:[%s6 + $0x8] sm:$0xf]
  %v1073 = vld [vmem:[%s6 + $0xc] sm:$0xf]
  %v1074 = vld [vmem:[%s6 + $0x10] sm:$0xf]
  %v1075 = vld [vmem:[%s6 + $0x14] sm:$0xf]
  %v1076 = vld [vmem:[%s6 + $0x18] sm:$0xf]
  %v1077 = vld [vmem:[%s6 + $0x1c] sm:$0xf]
  %v1078 = vld [vmem:[%s6 + $0x20] sm:$0xf]
  %v1079 = vld [vmem:[%s6 + $0x24] sm:$0xf]
  %v1080 = vld [vmem:[%s6 + $0x28] sm:$0xf]
  %v1081 = vld [vmem:[%s6 + $0x2c] sm:$0xf]
  %v1082 = vld [vmem:[%s6 + $0x30] sm:$0xf]
  %v1083 = vld [vmem:[%s6 + $0x34] sm:$0xf]
  %v1084 = vld [vmem:[%s6 + $0x38] sm:$0xf]
  %v1085 = vld [vmem:[%s6 + $0x3c] sm:$0xf]
  %v1102 = vunpack.c.l.b16 %v1070
  %v1103 = vunpack.c.l.b16 %v1071
  %v1104 = vunpack.c.l.b16 %v1072
  %v1105 = vunpack.c.l.b16 %v1073
  %v1106 = vunpack.c.l.b16 %v1074
  %v1107 = vunpack.c.l.b16 %v1075
  %v1108 = vunpack.c.l.b16 %v1076
  %v1109 = vunpack.c.l.b16 %v1077
  %v1110 = vunpack.c.l.b16 %v1078
  %v1111 = vunpack.c.l.b16 %v1079
  %v1112 = vunpack.c.l.b16 %v1080
  %v1113 = vunpack.c.l.b16 %v1081
  %v1114 = vunpack.c.l.b16 %v1082
  %v1115 = vunpack.c.l.b16 %v1083
  %v1116 = vunpack.c.l.b16 %v1084
  %v1117 = vunpack.c.l.b16 %v1085
  %v1118 = vpack.c.b16 %v1103, %v1102
  %v1119 = vpack.c.b16 %v1105, %v1104
  %v1120 = vpack.c.b16 %v1107, %v1106
  %v1121 = vpack.c.b16 %v1109, %v1108
  %v1122 = vpack.c.b16 %v1111, %v1110
  %v1123 = vpack.c.b16 %v1113, %v1112
  %v1124 = vpack.c.b16 %v1115, %v1114
  %v1125 = vpack.c.b16 %v1117, %v1116
  %1134 = vmatprep.subr.bf16.mxu0 0
  %1135 = vmatpush1.bf16.msra.mxu0 %v1118
  %1136 = vmatprep.subr.bf16.mxu0 0
  %1137 = vmatpush1.bf16.msra.mxu0 %v1119
  %1138 = vmatprep.subr.bf16.mxu0 0
  %1139 = vmatpush1.bf16.msra.mxu0 %v1120
  %1140 = vmatprep.subr.bf16.mxu0 0
  %1141 = vmatpush1.bf16.msra.mxu0 %v1121
  %1142 = vmatprep.subr.bf16.mxu0 0
  %1143 = vmatpush1.bf16.msra.mxu0 %v1122
  %1144 = vmatprep.subr.bf16.mxu0 0
  %1145 = vmatpush1.bf16.msra.mxu0 %v1123
  %1146 = vmatprep.subr.bf16.mxu0 0
  %1147 = vmatpush1.bf16.msra.mxu0 %v1124
  %1148 = vmatprep.subr.bf16.mxu0 0
  %1149 = vmatpush1.bf16.msra.mxu0 %v1125
  %1150 = vmatprep.subr.bf16.mxu0 0
  %1151 = vmatpush1.bf16.msra.mxu0 0
  %1152 = vmatprep.subr.bf16.mxu0 0
  %1153 = vmatpush1.bf16.msra.mxu0 0
  %1154 = vmatprep.subr.bf16.mxu0 0
  %1155 = vmatpush1.bf16.msra.mxu0 0
  %1156 = vmatprep.subr.bf16.mxu0 0
  %1157 = vmatpush1.bf16.msra.mxu0 0
  %1158 = vmatprep.subr.bf16.mxu0 0
  %1159 = vmatpush1.bf16.msra.mxu0 0
  %1160 = vmatprep.subr.bf16.mxu0 0
  %1161 = vmatpush1.bf16.msra.mxu0 0
  %1162 = vmatprep.subr.bf16.mxu0 0
  %1163 = vmatpush1.bf16.msra.mxu0 0
  %1164 = vmatprep.subr.bf16.mxu0 0
  %1165 = vmatpush1.bf16.msra.mxu0 0
  %1166 = vmatprep.mubr.bf16.mxu0 0
  %1167 = vmatmul.mubr.bf16.gmra.mrb[0].mxu0 %v1068
  %v1168 = vpop.f32.mrb[0].mxu0
  %v1169 = vadd.f32 %v38, %v1168
  %v1170 = vpop.f32.mrb[0].mxu0
  %v1171 = vpop.f32.mrb[0].mxu0
  %v1172 = vadd.f32 %v38, %v1171
  %v1173 = vpop.f32.mrb[0].mxu0
  %1174 = vmatprep.mubr.bf16.mxu0 0
  %1175 = vmatmul.mubr.bf16.gmra.mrb[0].mxu0 %v1069
  %v1176 = vpop.f32.mrb[0].mxu0
  %v1177 = vadd.f32 %v38, %v1176
  %v1178 = vpop.f32.mrb[0].mxu0
  %v1179 = vpop.f32.mrb[0].mxu0
  %v1180 = vadd.f32 %v38, %v1179
  %v1181 = vpop.f32.mrb[0].mxu0
  %1182 = vdwg.mxu0
  %v1183 = vadd.f32 %v895, %v1169
  %v1184 = vadd.f32 %v896, %v1172
  %v1185 = vadd.f32 %v897, %v1177
  %v1186 = vadd.f32 %v898, %v1180
  %v1187 = vpack.c.bf16 %v1184, %v1183
  %v1188 = vpack.c.bf16 %v1186, %v1185
  %v1189 = vld [vmem:[%s7] sm:$0xff]
  %v1190 = vld [vmem:[%s7 + $0x8] sm:$0xff]
  %v1191 = vld [vmem:[%s7 + $0x10] sm:$0xff]
  %v1192 = vld [vmem:[%s7 + $0x18] sm:$0xff]
  %v1194 = vlaneseq
  %v1195 = vshrl.u32 %v1194, 7
  %v1196 = vsub.s32 0, %v1195
  %v1197 = vrot.slane %v42, %v1196
  %v1198 = vlaneseq
  %v1199 = vshrl.u32 %v1198, 7
  %v1200 = vsub.s32 1, %v1199
  %v1201 = vrot.slane %v42, %v1200
  %v1208 = vunpack.c.l.b16 %v1189
  %v1209 = vunpack.c.h.b16 %v1189
  %v1210 = vunpack.c.l.b16 %v1190
  %v1211 = vunpack.c.h.b16 %v1190
  %v1212 = vunpack.c.l.b16 %v1191
  %v1213 = vunpack.c.h.b16 %v1191
  %v1214 = vunpack.c.l.b16 %v1192
  %v1215 = vunpack.c.h.b16 %v1192
  %v1216 = vpack.c.b16 %v1210, %v1208
  %v1217 = vpack.c.b16 %v1211, %v1209
  %v1218 = vpack.c.b16 %v1214, %v1212
  %v1219 = vpack.c.b16 %v1215, %v1213
  %v1225 = vsel %vm141, %v1187, 0
  %v1228 = vsel %vm141, %v1188, 0
  %1230 = vmatprep.subr.bf16.mxu0 %v1217
  %1231 = vmatpush1.bf16.msra.mxu0 %v1216
  %1232 = vmatprep.subr.bf16.mxu0 %v1219
  %1233 = vmatpush1.bf16.msra.mxu0 %v1218
  %1234 = vmatprep.subr.bf16.mxu0 0
  %1235 = vmatpush1.bf16.msra.mxu0 0
  %1236 = vmatprep.subr.bf16.mxu0 0
  %1237 = vmatpush1.bf16.msra.mxu0 0
  %1238 = vmatprep.subr.bf16.mxu0 0
  %1239 = vmatpush1.bf16.msra.mxu0 0
  %1240 = vmatprep.subr.bf16.mxu0 0
  %1241 = vmatpush1.bf16.msra.mxu0 0
  %1242 = vmatprep.subr.bf16.mxu0 0
  %1243 = vmatpush1.bf16.msra.mxu0 0
  %1244 = vmatprep.subr.bf16.mxu0 0
  %1245 = vmatpush1.bf16.msra.mxu0 0
  %1246 = vmatprep.subr.bf16.mxu0 0
  %1247 = vmatpush1.bf16.msra.mxu0 0
  %1248 = vmatprep.subr.bf16.mxu0 0
  %1249 = vmatpush1.bf16.msra.mxu0 0
  %1250 = vmatprep.subr.bf16.mxu0 0
  %1251 = vmatpush1.bf16.msra.mxu0 0
  %1252 = vmatprep.subr.bf16.mxu0 0
  %1253 = vmatpush1.bf16.msra.mxu0 0
  %1254 = vmatprep.subr.bf16.mxu0 0
  %1255 = vmatpush1.bf16.msra.mxu0 0
  %1256 = vmatprep.subr.bf16.mxu0 0
  %1257 = vmatpush1.bf16.msra.mxu0 0
  %1258 = vmatprep.subr.bf16.mxu0 0
  %1259 = vmatpush1.bf16.msra.mxu0 0
  %1260 = vmatprep.subr.bf16.mxu0 0
  %1261 = vmatpush1.bf16.msra.mxu0 0
  %1262 = vmatprep.mubr.bf16.mxu0 0
  %1263 = vmatmul.mubr.bf16.gmra.mrb[0].mxu0 %v1225
  %v1264 = vpop.f32.mrb[0].mxu0
  %v1265 = vadd.f32 %v1197, %v1264
  %v1266 = vpop.f32.mrb[0].mxu0
  %v1267 = vadd.f32 %v1201, %v1266
  %v1268 = vpop.f32.mrb[0].mxu0
  %v1269 = vadd.f32 %v1197, %v1268
  %v1270 = vpop.f32.mrb[0].mxu0
  %v1271 = vadd.f32 %v1201, %v1270
  %1272 = vmatprep.mubr.bf16.mxu0 0
  %1273 = vmatmul.mubr.bf16.gmra.mrb[0].mxu0 %v1228
  %v1274 = vpop.f32.mrb[0].mxu0
  %v1275 = vadd.f32 %v1197, %v1274
  %v1276 = vpop.f32.mrb[0].mxu0
  %v1277 = vadd.f32 %v1201, %v1276
  %v1278 = vpop.f32.mrb[0].mxu0
  %v1279 = vadd.f32 %v1197, %v1278
  %v1280 = vpop.f32.mrb[0].mxu0
  %v1281 = vadd.f32 %v1201, %v1280
  %1282 = vdwg.mxu0
  %v1283 = vadd.f32 %v1267, %v1271
  %v1284 = vrot.slane %v1283, 4
  %v1285 = vadd.f32 %v1283, %v1284
  %v1286 = vrot.slane %v1285, 2
  %v1287 = vadd.f32 %v1285, %v1286
  %v1288 = vrot.slane %v1287, 1
  %v1289 = vadd.f32 %v1287, %v1288
  %v1290 = vadd.f32 %v1277, %v1281
  %v1291 = vrot.slane %v1290, 4
  %v1292 = vadd.f32 %v1290, %v1291
  %v1293 = vrot.slane %v1292, 2
  %v1294 = vadd.f32 %v1292, %v1293
  %v1295 = vrot.slane %v1294, 1
  %v1296 = vadd.f32 %v1294, %v1295
  %v1297 = vrcp.pop 16.0
  %v1298 = vmul.f32 %v1289, %v1297
  %v1299 = vmul.f32 %v1296, %v1297
  %1300 = vst [vmem:[%s9] sm:$0xff] %v1265
  %1301 = vst [vmem:[%s9 + $0x8] sm:$0xff] %v1269
  %1302 = vst [vmem:[%s9 + $0x10] sm:$0xff] %v1275
  %1303 = vst [vmem:[%s9 + $0x18] sm:$0xff] %v1279
  %vm1306 = vcmask 1041409
  %v1307 = vsel %vm1306, %v1299, %v1298
  %1309 = vst [vmem:[%s9 + $0x20] sm:$0x3] %v1307
  // Predicated region
  $region38: #{_lambda_.1} parent=0 // pred_check
    _
  $region39: #{_lambda_.1} parent=0 // pred_check_branch
    %1311 = sbr.rel (0) target = $region41
  $region40: #{_lambda_.1} parent=0 // pred_region
    _
  $region41: #{_lambda_.1} parent=0 // pred_fallthru
    _
  // Predicated region
  $region42: #{_lambda_.1} parent=0 // pred_check
    _
  $region43: #{_lambda_.1} parent=0 // pred_check_branch
    %1313 = sbr.rel (0) target = $region45
  $region44: #{_lambda_.1} parent=0 // pred_region
    _
  $region45: #{_lambda_.1} parent=0 // pred_fallthru
    _

</llo_original>
